<compile_context>
chip_gen: v7x
topology: tpu7x:2x2x1
jax: 0.10.0
libtpu: 0.0.40
codegen_flags: <defaults>
</compile_context>

<pallas_src>
from functools import partial

import jax
import jax.numpy as jnp
from jax.experimental import pallas as pl
from jax.experimental.pallas import tpu as pltpu

EPS = 1e-5
_SUBLANE = {4: 8, 2: 16, 1: 32}          # sublane pack per itemsize (f32 / bf16 / 8-bit)
_MIN_STEP_BYTES = 128 * 1024             # keep per-step DMA >= ~0.1-0.2 us of HBM traffic


def _tpu_vmem_capacity_bytes():
    try:
        return int(pltpu.get_tpu_info().vmem_capacity_bytes)
    except Exception:
        return 64 * 1024 * 1024          # conservative fallback (v7x per-TC VMEM)


_VMEM_CAP = _tpu_vmem_capacity_bytes()
_DEFAULT_BUDGET = int(0.35 * _VMEM_CAP)  # picker budget (double-buffered blocks + f32 temps)


def _vmem_limit_for(budget):
    # Compiler scoped-VMEM limit: budget + headroom, floored at 32 MiB, capped at 90% of VMEM.
    return min(int(0.9 * _VMEM_CAP), max(budget + 8 * 1024 * 1024, 32 * 1024 * 1024))


# ----------------------------- kernels --------------------------------------
def _bn_add_fused_kernel(x_ref, y_ref, gamma_ref, beta_ref, o_ref):
    # x_ref / y_ref / o_ref: (N, tc, HW);  gamma_ref / beta_ref: (tc, 1) f32
    n, _, hw = x_ref.shape
    inv_l = 1.0 / (n * hw)

    if n == 1:
        # N == 1: skip the batch-axis fold; work directly on (tc, HW) slabs
        # (avoids extra full-block temporaries — cheap insurance on v5e).
        x = x_ref[0].astype(jnp.float32)                   # (tc, HW)
        y = y_ref[0].astype(jnp.float32)
        mean = jnp.sum(x, axis=-1, keepdims=True) * inv_l  # (tc, 1)
        xc = x - mean
        var = jnp.sum(xc * xc, axis=-1, keepdims=True) * inv_l   # centered: always >= 0
        inv_std = jax.lax.rsqrt(var + EPS)
        scale = inv_std * gamma_ref[...]                   # (tc, 1)
        o_ref[0] = (xc * scale + beta_ref[...] + y).astype(o_ref.dtype)
    else:
        x = x_ref[...].astype(jnp.float32)                 # (N, tc, HW)
        y = y_ref[...].astype(jnp.float32)
        x_nb = jnp.sum(x, axis=0)                          # (tc, HW)
        mean = jnp.sum(x_nb, axis=-1, keepdims=True) * inv_l        # (tc, 1)
        xc = x - mean[None]                                # (N, tc, HW)
        var = jnp.sum(jnp.sum(xc * xc, axis=0), axis=-1, keepdims=True) * inv_l
        inv_std = jax.lax.rsqrt(var + EPS)
        scale = (inv_std * gamma_ref[...])[None]           # (1, tc, 1)
        shift = beta_ref[...][None]
        o_ref[...] = (xc * scale + shift + y).astype(o_ref.dtype)


def _bn_stats_kernel(x_ref, sum_ref, sumsq_ref):
    # Accumulate per-channel sum / sum-of-squares across the (arbitrary) batch
    # grid axis; the output blocks stay resident as accumulators.
    @pl.when(pl.program_id(1) == 0)
    def _():
        sum_ref[...] = jnp.zeros_like(sum_ref)
        sumsq_ref[...] = jnp.zeros_like(sumsq_ref)

    x = x_ref[...].astype(jnp.float32)                     # (nb, tc, HW)
    x_nb = jnp.sum(x, axis=0)                              # (tc, HW)
    sum_ref[...] += jnp.sum(x_nb, axis=-1, keepdims=True)
    sumsq_ref[...] += jnp.sum(jnp.sum(x * x, axis=0), axis=-1, keepdims=True)


def _bn_apply_kernel(x_ref, y_ref, scale_ref, shift_ref, o_ref):
    x = x_ref[...].astype(jnp.float32)
    y = y_ref[...].astype(jnp.float32)
    scale = scale_ref[...][None]                           # (1, tc, 1)
    shift = shift_ref[...][None]
    o_ref[...] = (x * scale + shift + y).astype(o_ref.dtype)


# --------------------------- tiling helpers ----------------------------------
def _channel_tiles(C, sublane):
    divs = [d for d in range(sublane, C + 1, sublane) if C % d == 0]
    return divs if divs else [C]             # full-extent channel block is always legal


def _fits(block_elems, itemsize, budget, n_streams, n_f32_temps):
    # double-buffered HBM-dtype blocks + in-kernel f32 temporaries
    return 2 * n_streams * block_elems * itemsize + n_f32_temps * block_elems * 4 <= budget


def _pick_channel_tile(C, sublane, elems_per_channel, itemsize, budget,
                       *, n_streams=3, n_f32_temps=4):
    """Largest channel tile that fits `budget`, preferring >=4 grid steps (then
    >=2) so v7x's two TensorCores each get >=2 pipelined steps, subject to a
    per-step DMA-size floor so per-step overhead never dominates."""
    divs = _channel_tiles(C, sublane)
    fit = [d for d in divs
           if _fits(d * elems_per_channel, itemsize, budget, n_streams, n_f32_temps)]
    if not fit:
        return None
    for min_steps in (4, 2):
        cand = [d for d in fit
                if C // d >= min_steps
                and n_streams * d * elems_per_channel * itemsize >= _MIN_STEP_BYTES]
        if cand:
            return max(cand)
    return max(fit)


# ------------------------------ wrapper --------------------------------------
@partial(jax.jit, static_argnames=("vmem_budget_bytes", "alias_residual"))
def batchnorm_add(x98, x107, gamma, beta, *,
                  vmem_budget_bytes=_DEFAULT_BUDGET, alias_residual=False):
    """BatchNorm2d(x98) (training-mode batch stats, affine) + x107.

    x98, x107: (N, C, H, W);  gamma, beta: (C,)
    Set alias_residual=True only if the caller donates x107 (avoids a second
    N*C*H*W HBM allocation; without donation XLA inserts a defensive copy).
    """
    # TODO(synk): running_mean/running_var (momentum=0.1) buffer updates are not
    # emitted; only the forward output of the module is produced.
    N, C, H, W = x98.shape
    HW = H * W
    dtype = x98.dtype
    itemsize = jnp.dtype(dtype).itemsize
    sublane = _SUBLANE.get(itemsize, 8)
    vmem_limit = _vmem_limit_for(vmem_budget_bytes)
    total = N * C * HW
    aliases = {1: 0} if alias_residual else {}

    # Free reshapes only — no transposes, no extra HBM round trips.
    x3 = x98.reshape(N, C, HW)
    y3 = x107.reshape(N, C, HW)
    g = gamma.reshape(C, 1).astype(jnp.float32)
    b = beta.reshape(C, 1).astype(jnp.float32)

    # ---------------- single-pass fused path (whole N*HW row fits VMEM) ------
    tc = _pick_channel_tile(C, sublane, N * HW, itemsize, vmem_budget_bytes,
                            n_streams=3, n_f32_temps=4)
    if tc is not None:
        out3 = pl.pallas_call(
            _bn_add_fused_kernel,
            out_shape=jax.ShapeDtypeStruct((N, C, HW), dtype),
            grid_spec=pltpu.PrefetchScalarGridSpec(
                num_scalar_prefetch=0,
                grid=(C // tc,),
                in_specs=[
                    pl.BlockSpec((N, tc, HW), lambda i: (0, i, 0)),
                    pl.BlockSpec((N, tc, HW), lambda i: (0, i, 0)),
                    pl.BlockSpec((tc, 1), lambda i: (i, 0)),
                    pl.BlockSpec((tc, 1), lambda i: (i, 0)),
                ],
                out_specs=pl.BlockSpec((N, tc, HW), lambda i: (0, i, 0)),
            ),
            input_output_aliases=aliases,
            cost_estimate=pl.CostEstimate(
                flops=8 * total, transcendentals=C,
                bytes_accessed=3 * total * itemsize),
            compiler_params=pltpu.CompilerParams(
                dimension_semantics=("parallel",),
                vmem_limit_bytes=vmem_limit,
            ),
        )(x3, y3, g, b)
        return out3.reshape(N, C, H, W)

    # ---------------- two-pass fallback for very large N*H*W -----------------
    # Pass 1: per-channel sum / sumsq accumulated over batch chunks.
    tc = (_pick_channel_tile(C, sublane, HW, itemsize, vmem_budget_bytes,
                             n_streams=3, n_f32_temps=4)
          or min(_channel_tiles(C, sublane)))

    def _pick_nb(n_streams, n_f32_temps):
        for d in range(N, 0, -1):
            if N % d == 0 and _fits(d * tc * HW, itemsize, vmem_budget_bytes,
                                    n_streams, n_f32_temps):
                return d
        return 1

    nb_stats = _pick_nb(1, 3)    # stats pass streams only x (+ tiny (tc,1) outputs)
    nb_apply = _pick_nb(3, 4)    # apply pass streams x, y, out

    sums, sumsqs = pl.pallas_call(
        _bn_stats_kernel,
        out_shape=(jax.ShapeDtypeStruct((C, 1), jnp.float32),
                   jax.ShapeDtypeStruct((C, 1), jnp.float32)),
        grid_spec=pltpu.PrefetchScalarGridSpec(
            num_scalar_prefetch=0,
            grid=(C // tc, N // nb_stats),
            in_specs=[pl.BlockSpec((nb_stats, tc, HW), lambda c, n: (n, c, 0))],
            out_specs=(pl.BlockSpec((tc, 1), lambda c, n: (c, 0)),
                       pl.BlockSpec((tc, 1), lambda c, n: (c, 0))),
        ),
        cost_estimate=pl.CostEstimate(
            flops=3 * total, transcendentals=0,
            bytes_accessed=total * itemsize),
        compiler_params=pltpu.CompilerParams(
            dimension_semantics=("parallel", "arbitrary"),
            vmem_limit_bytes=vmem_limit,
        ),
    )(x3)

    inv_l = 1.0 / (N * HW)
    mean = sums * inv_l
    # E[x^2]-mean^2 is only used on this rarely-taken path; clamp guards f32 cancellation.
    var = jnp.maximum(sumsqs * inv_l - mean * mean, 0.0)
    inv_std = jax.lax.rsqrt(var + EPS)
    scale = inv_std * g                      # (C, 1)
    shift = b - mean * scale                 # (C, 1)

    # Pass 2: elementwise normalize + residual add (one extra read of x only).
    out3 = pl.pallas_call(
        _bn_apply_kernel,
        out_shape=jax.ShapeDtypeStruct((N, C, HW), dtype),
        grid_spec=pltpu.PrefetchScalarGridSpec(
            num_scalar_prefetch=0,
            grid=(C // tc, N // nb_apply),
            in_specs=[
                pl.BlockSpec((nb_apply, tc, HW), lambda c, n: (n, c, 0)),
                pl.BlockSpec((nb_apply, tc, HW), lambda c, n: (n, c, 0)),
                pl.BlockSpec((tc, 1), lambda c, n: (c, 0)),
                pl.BlockSpec((tc, 1), lambda c, n: (c, 0)),
            ],
            out_specs=pl.BlockSpec((nb_apply, tc, HW), lambda c, n: (n, c, 0)),
        ),
        input_output_aliases=aliases,
        cost_estimate=pl.CostEstimate(
            flops=3 * total, transcendentals=0,
            bytes_accessed=3 * total * itemsize),
        compiler_params=pltpu.CompilerParams(
            dimension_semantics=("parallel", "parallel"),
            vmem_limit_bytes=vmem_limit,
        ),
    )(x3, y3, scale, shift)
    return out3.reshape(N, C, H, W)


# ------------------------------ reference ------------------------------------
def reference(x98, x107, gamma, beta):
    x = x98.astype(jnp.float32)
    mean = jnp.mean(x, axis=(0, 2, 3), keepdims=True)
    var = jnp.mean((x - mean) ** 2, axis=(0, 2, 3), keepdims=True)
    xn = (x - mean) * jax.lax.rsqrt(var + EPS)
    xn = xn * gamma.reshape(1, -1, 1, 1) + beta.reshape(1, -1, 1, 1)
    return (xn + x107.astype(jnp.float32)).astype(x98.dtype)


if __name__ == "__main__":
    key = jax.random.PRNGKey(0)
    k1, k2, k3, k4, k5, k6 = jax.random.split(key, 6)

    # Shapes from the original module: (1, 1344, 14, 14).
    N, C, H, W = 1, 1344, 14, 14
    x98 = jax.random.normal(k1, (N, C, H, W), dtype=jnp.float32)
    x107 = jax.random.normal(k2, (N, C, H, W), dtype=jnp.float32)
    gamma = 1.0 + 0.1 * jax.random.normal(k3, (C,), dtype=jnp.float32)
    beta = 0.1 * jax.random.normal(k4, (C,), dtype=jnp.float32)

    out = jax.block_until_ready(batchnorm_add(x98, x107, gamma, beta))
    ref = reference(x98, x107, gamma, beta)
    assert out.shape == (N, C, H, W)
    assert jnp.allclose(out, ref, atol=1e-4, rtol=1e-4), "single-pass mismatch"

    # Residual-aliased variant (correctness check; real win requires donation).
    out_a = jax.block_until_ready(
        batchnorm_add(x98, x107, gamma, beta, alias_residual=True))
    assert jnp.allclose(out_a, ref, atol=1e-4, rtol=1e-4), "aliased-path mismatch"

    # Small N>1 case (exercises the batch-axis reduction in the fused kernel).
    N2, C2, H2, W2 = 2, 64, 16, 16
    a = jax.random.normal(k5, (N2, C2, H2, W2), dtype=jnp.float32)
    r = jax.random.normal(k6, (N2, C2, H2, W2), dtype=jnp.float32)
    g2 = jnp.ones((C2,), jnp.float32)
    b2 = jnp.zeros((C2,), jnp.float32)
    out2 = jax.block_until_ready(batchnorm_add(a, r, g2, b2))
    assert jnp.allclose(out2, reference(a, r, g2, b2), atol=1e-4, rtol=1e-4), \
        "fused N>1 mismatch"

    # Force the two-pass (stats + apply) fallback with a tiny VMEM budget.
    out3 = jax.block_until_ready(
        batchnorm_add(a, r, g2, b2, vmem_budget_bytes=64 * 1024))
    assert jnp.allclose(out3, reference(a, r, g2, b2), atol=1e-4, rtol=1e-4), \
        "two-pass fallback mismatch"

    print("KERNEL_OK")
</pallas_src>

<mosaic_0001>
module attributes {stable_mosaic.version = 11 : i64} {
  func.func @_bn_add_fused_kernel(%arg0: i32, %arg1: memref<1x336x196xf32, #tpu.memory_space<vmem>>, %arg2: memref<1x336x196xf32, #tpu.memory_space<vmem>>, %arg3: memref<336x1xf32, #tpu.memory_space<vmem>>, %arg4: memref<336x1xf32, #tpu.memory_space<vmem>>, %arg5: memref<1x336x196xf32, #tpu.memory_space<vmem>>) attributes {dimension_semantics = [#tpu.dimension_semantics<parallel>], iteration_bounds = array<i64: 4>, scalar_prefetch = 0 : i64, scratch_operands = 0 : i64, tpu.core_type = #tpu.core_type<tc>, window_params = [{transform_indices = @transform_0, window_bounds = array<i64: 1, 336, 196>}, {transform_indices = @transform_1, window_bounds = array<i64: 1, 336, 196>}, {transform_indices = @transform_2, window_bounds = array<i64: 336, 1>}, {transform_indices = @transform_3, window_bounds = array<i64: 336, 1>}, {transform_indices = @transform_4, window_bounds = array<i64: 1, 336, 196>}]} {
    %c0 = arith.constant 0 : index
    %c0_0 = arith.constant 0 : index
    %c0_1 = arith.constant 0 : index
    %0 = vector.load %arg1[%c0, %c0_0, %c0_1] : memref<1x336x196xf32, #tpu.memory_space<vmem>>, vector<1x336x196xf32>
    %1 = vector.shape_cast %0 : vector<1x336x196xf32> to vector<336x196xf32>
    %c0_2 = arith.constant 0 : index
    %c0_3 = arith.constant 0 : index
    %c0_4 = arith.constant 0 : index
    %2 = vector.load %arg2[%c0_2, %c0_3, %c0_4] : memref<1x336x196xf32, #tpu.memory_space<vmem>>, vector<1x336x196xf32>
    %3 = vector.shape_cast %2 : vector<1x336x196xf32> to vector<336x196xf32>
    %cst = arith.constant dense<0.000000e+00> : vector<336xf32>
    %4 = vector.multi_reduction <add>, %1, %cst [1] : vector<336x196xf32> to vector<336xf32>
    %5 = vector.shape_cast %4 : vector<336xf32> to vector<336x1xf32>
    %cst_5 = arith.constant 0.00510204071 : f32
    %6 = vector.broadcast %cst_5 : f32 to vector<336x1xf32>
    %7 = arith.mulf %5, %6 : vector<336x1xf32>
    %8 = vector.broadcast %7 : vector<336x1xf32> to vector<336x196xf32>
    %9 = arith.subf %1, %8 : vector<336x196xf32>
    %10 = arith.mulf %9, %9 : vector<336x196xf32>
    %cst_6 = arith.constant dense<0.000000e+00> : vector<336xf32>
    %11 = vector.multi_reduction <add>, %10, %cst_6 [1] : vector<336x196xf32> to vector<336xf32>
    %12 = vector.shape_cast %11 : vector<336xf32> to vector<336x1xf32>
    %cst_7 = arith.constant 0.00510204071 : f32
    %13 = vector.broadcast %cst_7 : f32 to vector<336x1xf32>
    %14 = arith.mulf %12, %13 : vector<336x1xf32>
    %cst_8 = arith.constant 9.99999974E-6 : f32
    %15 = vector.broadcast %cst_8 : f32 to vector<336x1xf32>
    %16 = arith.addf %14, %15 : vector<336x1xf32>
    %17 = math.rsqrt %16 : vector<336x1xf32>
    %c0_9 = arith.constant 0 : index
    %c0_10 = arith.constant 0 : index
    %18 = vector.load %arg3[%c0_9, %c0_10] : memref<336x1xf32, #tpu.memory_space<vmem>>, vector<336x1xf32>
    %19 = arith.mulf %17, %18 : vector<336x1xf32>
    %20 = vector.broadcast %19 : vector<336x1xf32> to vector<336x196xf32>
    %21 = arith.mulf %9, %20 : vector<336x196xf32>
    %c0_11 = arith.constant 0 : index
    %c0_12 = arith.constant 0 : index
    %22 = vector.load %arg4[%c0_11, %c0_12] : memref<336x1xf32, #tpu.memory_space<vmem>>, vector<336x1xf32>
    %23 = vector.broadcast %22 : vector<336x1xf32> to vector<336x196xf32>
    %24 = arith.addf %21, %23 : vector<336x196xf32>
    %25 = arith.addf %24, %3 : vector<336x196xf32>
    %c0_13 = arith.constant 0 : index
    %c0_14 = arith.constant 0 : index
    %c0_15 = arith.constant 0 : index
    %26 = vector.load %arg5[%c0_13, %c0_14, %c0_15] : memref<1x336x196xf32, #tpu.memory_space<vmem>>, vector<1x336x196xf32>
    %27 = vector.shape_cast %26 : vector<1x336x196xf32> to vector<336x196xf32>
    %28 = vector.shape_cast %25 : vector<336x196xf32> to vector<1x336x196xf32>
    tpu.vector_store %arg5[%c0_13, %c0_14, %c0_15], %28 {strides = array<i32>} : memref<1x336x196xf32, #tpu.memory_space<vmem>>, vector<1x336x196xf32>,
    return
  }
  func.func @transform_0(%arg0: i32) -> (i32, i32, i32) {
    %c0_i32 = arith.constant 0 : i32
    %c0_i32_0 = arith.constant 0 : i32
    %c0_i32_1 = arith.constant 0 : i32
    return %c0_i32, %arg0, %c0_i32_0 : i32, i32, i32
  }
  func.func @transform_1(%arg0: i32) -> (i32, i32, i32) {
    %c0_i32 = arith.constant 0 : i32
    %c0_i32_0 = arith.constant 0 : i32
    %c0_i32_1 = arith.constant 0 : i32
    return %c0_i32, %arg0, %c0_i32_0 : i32, i32, i32
  }
  func.func @transform_2(%arg0: i32) -> (i32, i32) {
    %c0_i32 = arith.constant 0 : i32
    %c0_i32_0 = arith.constant 0 : i32
    return %arg0, %c0_i32 : i32, i32
  }
  func.func @transform_3(%arg0: i32) -> (i32, i32) {
    %c0_i32 = arith.constant 0 : i32
    %c0_i32_0 = arith.constant 0 : i32
    return %arg0, %c0_i32 : i32, i32
  }
  func.func @transform_4(%arg0: i32) -> (i32, i32, i32) {
    %c0_i32 = arith.constant 0 : i32
    %c0_i32_0 = arith.constant 0 : i32
    %c0_i32_1 = arith.constant 0 : i32
    return %c0_i32, %arg0, %c0_i32_0 : i32, i32, i32
  }
}

</mosaic_0001>

<llo_original>
// kernel: batchnorm_add.1
$region0: #{batchnorm_add.1}
  #allocation0 [shape = 'u32[]', space=smem, size = 0x4, offset = 0x4, fixed_abs, tag = 'smem constant byte address 0x4 - core index']
  #allocation1 [shape = 'u32[144,128]{1,0:T(1,128)}', space=vmem, size = 0x12000, scoped, tag = 'internal scratch']
  %s0 = inlined_call_operand.vmem [shape: f32[1,1344,196], index: 0, kind: input, shape index: {}]
  %s1 = inlined_call_operand.vmem [shape: f32[1,1344,196], index: 1, kind: input, shape index: {}]
  %s2 = inlined_call_operand.vmem [shape: f32[1344,1], index: 2, kind: input, shape index: {}]
  %s3 = inlined_call_operand.vmem [shape: f32[1344,1], index: 3, kind: input, shape index: {}]
  %s4 = inlined_call_operand.vmem [shape: f32[1,1344,196], index: 4, kind: output, shape index: {}]
  %s5 = sld [smem:[#allocation0]]
  $region49: #{batchnorm_add.1} parent=0
    _
  %s7 = ssub.s32 1, %s5
  %s8 = scalar_select 0, %s7, %s5
  loop: start=0, step=1, limit=6
  $region2: #{batchnorm_add.1} parent=0 // loop_pre_header
    _
  $region3: #{batchnorm_add.1} parent=0 // loop_header
    %s10 = sphi 0, %s14
    %p11 = scmp.ge.s32.totalorder %s10, 6
    %s20 = sphi 0, %s22
    %s23 = sphi 0, %s20
    %s24 = sphi 0, %s23
    %s40 = sphi 0, %s24
    %s46 = sphi 0, %s48
    %s49 = sphi 0, %s46
    %s50 = sphi 0, %s49
    %s66 = sphi 0, %s50
    %s72 = sphi 0, %s74
    %s75 = sphi 0, %s72
    %s76 = sphi 0, %s75
    %s92 = sphi 0, %s76
    %s98 = sphi 0, %s100
    %s101 = sphi 0, %s98
    %s102 = sphi 0, %s101
    %s118 = sphi 0, %s102
    %s124 = sphi 0, %s126
    %s127 = sphi 0, %s124
    %s128 = sphi 0, %s127
    %s144 = sphi 0, %s128
  $region4: #{batchnorm_add.1} parent=0 // loop_header_branch
    %13 = sbr.rel (%p11) target = $region8
  $region5: #{batchnorm_add.1} parent=0 // loop_body
    %s15 = ssub.s32 %s10, 1
    %s16 = ssub.s32 %s10, 2
    %s17 = sadd.s32 %s10, 1
    %s18 = ssub.s32 %s10, %s17
    %p19 = scmp.eq.s32.totalorder %s18, 0
    %s21 = sadd.s32 %s20, 1
    %s22 = scalar_select %p19, %s20, %s21
    %p25 = pneg %p19
    %p26 = scmp.eq.s32.totalorder %s10, 3
    %p27 = por %p25, %p26
    %p28 = scmp.ne.s32.totalorder %s20, %s23
    %p29 = scmp.eq.s32.totalorder %s10, 0
    %p30 = por %p28, %p29
    %p31 = scmp.ne.s32.totalorder %s20, %s23
    %p32 = scmp.eq.s32.totalorder %s15, 3
    %p33 = por %p31, %p32
    %p34 = scmp.ne.s32.totalorder %s23, %s24
    %p35 = scmp.eq.s32.totalorder %s15, 0
    %p36 = por %p34, %p35
    %p37 = scmp.ne.s32.totalorder %s23, %s24
    %p38 = scmp.eq.s32.totalorder %s16, 3
    %p39 = por %p37, %p38
    %p41 = scmp.ne.s32.totalorder %s24, %s40
    %p42 = scmp.eq.s32.totalorder %s16, 0
    %p43 = por %p41, %p42
    %s44 = ssub.s32 %s10, %s17
    %p45 = scmp.eq.s32.totalorder %s44, 0
    %s47 = sadd.s32 %s46, 1
    %s48 = scalar_select %p45, %s46, %s47
    %p51 = pneg %p45
    %p52 = scmp.eq.s32.totalorder %s10, 3
    %p53 = por %p51, %p52
    %p54 = scmp.ne.s32.totalorder %s46, %s49
    %p55 = scmp.eq.s32.totalorder %s10, 0
    %p56 = por %p54, %p55
    %p57 = scmp.ne.s32.totalorder %s46, %s49
    %p58 = scmp.eq.s32.totalorder %s15, 3
    %p59 = por %p57, %p58
    %p60 = scmp.ne.s32.totalorder %s49, %s50
    %p61 = scmp.eq.s32.totalorder %s15, 0
    %p62 = por %p60, %p61
    %p63 = scmp.ne.s32.totalorder %s49, %s50
    %p64 = scmp.eq.s32.totalorder %s16, 3
    %p65 = por %p63, %p64
    %p67 = scmp.ne.s32.totalorder %s50, %s66
    %p68 = scmp.eq.s32.totalorder %s16, 0
    %p69 = por %p67, %p68
    %s70 = ssub.s32 %s10, %s17
    %p71 = scmp.eq.s32.totalorder %s70, 0
    %s73 = sadd.s32 %s72, 1
    %s74 = scalar_select %p71, %s72, %s73
    %p77 = pneg %p71
    %p78 = scmp.eq.s32.totalorder %s10, 3
    %p79 = por %p77, %p78
    %p80 = scmp.ne.s32.totalorder %s72, %s75
    %p81 = scmp.eq.s32.totalorder %s10, 0
    %p82 = por %p80, %p81
    %p83 = scmp.ne.s32.totalorder %s72, %s75
    %p84 = scmp.eq.s32.totalorder %s15, 3
    %p85 = por %p83, %p84
    %p86 = scmp.ne.s32.totalorder %s75, %s76
    %p87 = scmp.eq.s32.totalorder %s15, 0
    %p88 = por %p86, %p87
    %p89 = scmp.ne.s32.totalorder %s75, %s76
    %p90 = scmp.eq.s32.totalorder %s16, 3
    %p91 = por %p89, %p90
    %p93 = scmp.ne.s32.totalorder %s76, %s92
    %p94 = scmp.eq.s32.totalorder %s16, 0
    %p95 = por %p93, %p94
    %s96 = ssub.s32 %s10, %s17
    %p97 = scmp.eq.s32.totalorder %s96, 0
    %s99 = sadd.s32 %s98, 1
    %s100 = scalar_select %p97, %s98, %s99
    %p103 = pneg %p97
    %p104 = scmp.eq.s32.totalorder %s10, 3
    %p105 = por %p103, %p104
    %p106 = scmp.ne.s32.totalorder %s98, %s101
    %p107 = scmp.eq.s32.totalorder %s10, 0
    %p108 = por %p106, %p107
    %p109 = scmp.ne.s32.totalorder %s98, %s101
    %p110 = scmp.eq.s32.totalorder %s15, 3
    %p111 = por %p109, %p110
    %p112 = scmp.ne.s32.totalorder %s101, %s102
    %p113 = scmp.eq.s32.totalorder %s15, 0
    %p114 = por %p112, %p113
    %p115 = scmp.ne.s32.totalorder %s101, %s102
    %p116 = scmp.eq.s32.totalorder %s16, 3
    %p117 = por %p115, %p116
    %p119 = scmp.ne.s32.totalorder %s102, %s118
    %p120 = scmp.eq.s32.totalorder %s16, 0
    %p121 = por %p119, %p120
    %s122 = ssub.s32 %s10, %s17
    %p123 = scmp.eq.s32.totalorder %s122, 0
    %s125 = sadd.s32 %s124, 1
    %s126 = scalar_select %p123, %s124, %s125
    %p129 = pneg %p123
    %p130 = scmp.eq.s32.totalorder %s10, 3
    %p131 = por %p129, %p130
    %p132 = scmp.ne.s32.totalorder %s124, %s127
    %p133 = scmp.eq.s32.totalorder %s10, 0
    %p134 = por %p132, %p133
    %p135 = scmp.ne.s32.totalorder %s124, %s127
    %p136 = scmp.eq.s32.totalorder %s15, 3
    %p137 = por %p135, %p136
    %p138 = scmp.ne.s32.totalorder %s127, %s128
    %p139 = scmp.eq.s32.totalorder %s15, 0
    %p140 = por %p138, %p139
    %p141 = scmp.ne.s32.totalorder %s127, %s128
    %p142 = scmp.eq.s32.totalorder %s16, 3
    %p143 = por %p141, %p142
    %p145 = scmp.ne.s32.totalorder %s128, %s144
    %p146 = scmp.eq.s32.totalorder %s16, 0
    %p147 = por %p145, %p146
    %p148 = scmp.le.s32.totalorder 1, %s10
    %p149 = scmp.lt.s32.totalorder %s10, 5
    %p150 = pnand %p148, %p149
    %p151 = pneg %p150
    // Predicated region
    $region9: #{batchnorm_add.1} parent=5 // pred_check
      _
    $region10: #{batchnorm_add.1} parent=5 // pred_check_branch
      %153 = sbr.rel (%p150) target = $region12
    $region11: #{batchnorm_add.1} parent=5 // pred_region
      %s154 = ssub.s32 %s10, 1
    $region12: #{batchnorm_add.1} parent=5 // pred_fallthru
      _
    %p155 = scmp.lt.s32.totalorder %s10, 4
    // Predicated region
    $region13: #{batchnorm_add.1} parent=5 // pred_check
      %p156 = pneg %p155
    $region14: #{batchnorm_add.1} parent=5 // pred_check_branch
      %158 = sbr.rel (%p156) target = $region16
    $region15: #{batchnorm_add.1} parent=5 // pred_region
      // Predicated region
      $region17: #{batchnorm_add.1} parent=15 // pred_check
        %p159 = pneg %p30
      $region18: #{batchnorm_add.1} parent=15 // pred_check_branch
        %161 = sbr.rel (%p159) target = $region20
      $region19: #{batchnorm_add.1} parent=15 // pred_region
        %s162 = smul.u32 42, %s10
        %p163 = scmp.lt.s32.totalorder %s162, 167
        %s164 = scalar_select %p163, %s162, 167
        %s165 = smul.addr %s164, 2
        %s166 = smul.addr %s165, 8
        %s167 = scalar_lea.vmem %s0, %s166
        %s168 = smul.u32 42, %s10
      $region20: #{batchnorm_add.1} parent=15 // pred_fallthru
        _
      // Predicated region
      $region21: #{batchnorm_add.1} parent=15 // pred_check
        %p169 = pneg %p56
      $region22: #{batchnorm_add.1} parent=15 // pred_check_branch
        %171 = sbr.rel (%p169) target = $region24
      $region23: #{batchnorm_add.1} parent=15 // pred_region
        %s172 = smul.u32 42, %s10
        %p173 = scmp.lt.s32.totalorder %s172, 167
        %s174 = scalar_select %p173, %s172, 167
        %s175 = smul.addr %s174, 2
        %s176 = smul.addr %s175, 8
        %s177 = scalar_lea.vmem %s1, %s176
        %s178 = smul.u32 42, %s10
      $region24: #{batchnorm_add.1} parent=15 // pred_fallthru
        _
      // Predicated region
      $region25: #{batchnorm_add.1} parent=15 // pred_check
        %p179 = pneg %p82
      $region26: #{batchnorm_add.1} parent=15 // pred_check_branch
        %181 = sbr.rel (%p179) target = $region28
      $region27: #{batchnorm_add.1} parent=15 // pred_region
        %s182 = smul.u32 42, %s10
        %p183 = scmp.lt.s32.totalorder %s182, 167
        %s184 = scalar_select %p183, %s182, 167
        %s185 = smul.addr %s184, 8
        %s186 = scalar_lea.vmem %s2, %s185
        %s187 = smul.u32 42, %s10
      $region28: #{batchnorm_add.1} parent=15 // pred_fallthru
        _
      // Predicated region
      $region29: #{batchnorm_add.1} parent=15 // pred_check
        %p188 = pneg %p108
      $region30: #{batchnorm_add.1} parent=15 // pred_check_branch
        %190 = sbr.rel (%p188) target = $region32
      $region31: #{batchnorm_add.1} parent=15 // pred_region
        %s191 = smul.u32 42, %s10
        %p192 = scmp.lt.s32.totalorder %s191, 167
        %s193 = scalar_select %p192, %s191, 167
        %s194 = smul.addr %s193, 8
        %s195 = scalar_lea.vmem %s3, %s194
        %s196 = smul.u32 42, %s10
      $region32: #{batchnorm_add.1} parent=15 // pred_fallthru
        _
    $region16: #{batchnorm_add.1} parent=5 // pred_fallthru
      _
    %p197 = scmp.le.s32.totalorder 1, %s10
    %p198 = scmp.lt.s32.totalorder %s10, 5
    %p199 = pnand %p197, %p198
    %p200 = pneg %p199
    // Predicated region
    $region33: #{batchnorm_add.1} parent=5 // pred_check
      _
    $region34: #{batchnorm_add.1} parent=5 // pred_check_branch
      %202 = sbr.rel (%p199) target = $region36
    $region35: #{batchnorm_add.1} parent=5 // pred_region
      %s203 = ssub.s32 %s10, 1
      %s204 = smul.u32 42, %s15
      %p205 = scmp.lt.s32.totalorder %s204, 167
      %s206 = scalar_select %p205, %s204, 167
      %s207 = smul.addr %s206, 2
      %s208 = smul.addr %s207, 8
      %s209 = scalar_lea.vmem %s0, %s208
      %p210 = pneg %p36
      %p211 = pneg %p33
      %s212 = smul.u32 42, %s15
      %p213 = scmp.lt.s32.totalorder %s212, 167
      %s214 = scalar_select %p213, %s212, 167
      %s215 = smul.addr %s214, 2
      %s216 = smul.addr %s215, 8
      %s217 = scalar_lea.vmem %s1, %s216
      %p218 = pneg %p62
      %p219 = pneg %p59
      %s220 = smul.u32 42, %s15
      %p221 = scmp.lt.s32.totalorder %s220, 167
      %s222 = scalar_select %p221, %s220, 167
      %s223 = smul.addr %s222, 8
      %s224 = scalar_lea.vmem %s2, %s223
      %p225 = pneg %p88
      %p226 = pneg %p85
      %s227 = smul.u32 42, %s15
      %p228 = scmp.lt.s32.totalorder %s227, 167
      %s229 = scalar_select %p228, %s227, 167
      %s230 = smul.addr %s229, 8
      %s231 = scalar_lea.vmem %s3, %s230
      %p232 = pneg %p114
      %p233 = pneg %p111
      %p234 = pneg %p140
      %p235 = pneg %p137
      %s236 = smul.u32 42, %s15
      %p237 = scmp.lt.s32.totalorder %s236, 167
      %s238 = scalar_select %p237, %s236, 167
      %s239 = smul.addr %s238, 2
      %s240 = smul.addr %s239, 8
      %s241 = scalar_lea.vmem %s4, %s240
      %s242 = smul.u32 42, %s15
      %p243 = scmp.lt.s32.totalorder %s242, 167
      %s244 = scalar_select %p243, %s242, 167
      %s245 = smul.addr %s244, 2
      %s246 = smul.addr %s245, 8
      %s247 = scalar_lea.vmem %s0, %s246
      %s248 = smul.u32 42, %s15
      %s249 = smul.u32 42, %s15
      %p250 = scmp.lt.s32.totalorder %s249, 167
      %s251 = scalar_select %p250, %s249, 167
      %s252 = smul.addr %s251, 2
      %s253 = smul.addr %s252, 8
      %s254 = scalar_lea.vmem %s1, %s253
      %s255 = smul.u32 42, %s15
      %s256 = smul.u32 42, %s15
      %p257 = scmp.lt.s32.totalorder %s256, 167
      %s258 = scalar_select %p257, %s256, 167
      %s259 = smul.addr %s258, 8
      %s260 = scalar_lea.vmem %s2, %s259
      %s261 = smul.u32 42, %s15
      %s262 = smul.u32 42, %s15
      %p263 = scmp.lt.s32.totalorder %s262, 167
      %s264 = scalar_select %p263, %s262, 167
      %s265 = smul.addr %s264, 8
      %s266 = scalar_lea.vmem %s3, %s265
      %s267 = smul.u32 42, %s15
      %s268 = smul.u32 42, %s15
      %p269 = scmp.lt.s32.totalorder %s268, 167
      %s270 = scalar_select %p269, %s268, 167
      %s271 = smul.addr %s270, 2
      %s272 = smul.addr %s271, 8
      %s273 = scalar_lea.vmem %s4, %s272
      %s274 = smul.u32 42, %s15
      %v275 = vld [vmem:[%s247] sm:$0xff]
      %v276 = vld [vmem:[%s247 + $0x8] sm:$0xff]
      %v277 = vld [vmem:[%s247 + $0x10] sm:$0xff]
      %v278 = vld [vmem:[%s247 + $0x18] sm:$0xff]
      %v279 = vld [vmem:[%s247 + $0x20] sm:$0xff]
      %v280 = vld [vmem:[%s247 + $0x28] sm:$0xff]
      %v281 = vld [vmem:[%s247 + $0x30] sm:$0xff]
      %v282 = vld [vmem:[%s247 + $0x38] sm:$0xff]
      %v283 = vld [vmem:[%s247 + $0x40] sm:$0xff]
      %v284 = vld [vmem:[%s247 + $0x48] sm:$0xff]
      %v285 = vld [vmem:[%s247 + $0x50] sm:$0xff]
      %v286 = vld [vmem:[%s247 + $0x58] sm:$0xff]
      %v287 = vld [vmem:[%s247 + $0x60] sm:$0xff]
      %v288 = vld [vmem:[%s247 + $0x68] sm:$0xff]
      %v289 = vld [vmem:[%s247 + $0x70] sm:$0xff]
      %v290 = vld [vmem:[%s247 + $0x78] sm:$0xff]
      %v291 = vld [vmem:[%s247 + $0x80] sm:$0xff]
      %v292 = vld [vmem:[%s247 + $0x88] sm:$0xff]
      %v293 = vld [vmem:[%s247 + $0x90] sm:$0xff]
      %v294 = vld [vmem:[%s247 + $0x98] sm:$0xff]
      %v295 = vld [vmem:[%s247 + $0xa0] sm:$0xff]
      %v296 = vld [vmem:[%s247 + $0xa8] sm:$0xff]
      %v297 = vld [vmem:[%s247 + $0xb0] sm:$0xff]
      %v298 = vld [vmem:[%s247 + $0xb8] sm:$0xff]
      %v299 = vld [vmem:[%s247 + $0xc0] sm:$0xff]
      %v300 = vld [vmem:[%s247 + $0xc8] sm:$0xff]
      %v301 = vld [vmem:[%s247 + $0xd0] sm:$0xff]
      %v302 = vld [vmem:[%s247 + $0xd8] sm:$0xff]
      %v303 = vld [vmem:[%s247 + $0xe0] sm:$0xff]
      %v304 = vld [vmem:[%s247 + $0xe8] sm:$0xff]
      %v305 = vld [vmem:[%s247 + $0xf0] sm:$0xff]
      %v306 = vld [vmem:[%s247 + $0xf8] sm:$0xff]
      %v307 = vld [vmem:[%s247 + $0x100] sm:$0xff]
      %v308 = vld [vmem:[%s247 + $0x108] sm:$0xff]
      %v309 = vld [vmem:[%s247 + $0x110] sm:$0xff]
      %v310 = vld [vmem:[%s247 + $0x118] sm:$0xff]
      %v311 = vld [vmem:[%s247 + $0x120] sm:$0xff]
      %v312 = vld [vmem:[%s247 + $0x128] sm:$0xff]
      %v313 = vld [vmem:[%s247 + $0x130] sm:$0xff]
      %v314 = vld [vmem:[%s247 + $0x138] sm:$0xff]
      %v315 = vld [vmem:[%s247 + $0x140] sm:$0xff]
      %v316 = vld [vmem:[%s247 + $0x148] sm:$0xff]
      %v317 = vld [vmem:[%s247 + $0x150] sm:$0xff]
      %v318 = vld [vmem:[%s247 + $0x158] sm:$0xff]
      %v319 = vld [vmem:[%s247 + $0x160] sm:$0xff]
      %v320 = vld [vmem:[%s247 + $0x168] sm:$0xff]
      %v321 = vld [vmem:[%s247 + $0x170] sm:$0xff]
      %v322 = vld [vmem:[%s247 + $0x178] sm:$0xff]
      %v323 = vld [vmem:[%s247 + $0x180] sm:$0xff]
      %v324 = vld [vmem:[%s247 + $0x188] sm:$0xff]
      %v325 = vld [vmem:[%s247 + $0x190] sm:$0xff]
      %v326 = vld [vmem:[%s247 + $0x198] sm:$0xff]
      %v327 = vld [vmem:[%s247 + $0x1a0] sm:$0xff]
      %v328 = vld [vmem:[%s247 + $0x1a8] sm:$0xff]
      %v329 = vld [vmem:[%s247 + $0x1b0] sm:$0xff]
      %v330 = vld [vmem:[%s247 + $0x1b8] sm:$0xff]
      %v331 = vld [vmem:[%s247 + $0x1c0] sm:$0xff]
      %v332 = vld [vmem:[%s247 + $0x1c8] sm:$0xff]
      %v333 = vld [vmem:[%s247 + $0x1d0] sm:$0xff]
      %v334 = vld [vmem:[%s247 + $0x1d8] sm:$0xff]
      %v335 = vld [vmem:[%s247 + $0x1e0] sm:$0xff]
      %v336 = vld [vmem:[%s247 + $0x1e8] sm:$0xff]
      %v337 = vld [vmem:[%s247 + $0x1f0] sm:$0xff]
      %v338 = vld [vmem:[%s247 + $0x1f8] sm:$0xff]
      %v339 = vld [vmem:[%s247 + $0x200] sm:$0xff]
      %v340 = vld [vmem:[%s247 + $0x208] sm:$0xff]
      %v341 = vld [vmem:[%s247 + $0x210] sm:$0xff]
      %v342 = vld [vmem:[%s247 + $0x218] sm:$0xff]
      %v343 = vld [vmem:[%s247 + $0x220] sm:$0xff]
      %v344 = vld [vmem:[%s247 + $0x228] sm:$0xff]
      %v345 = vld [vmem:[%s247 + $0x230] sm:$0xff]
      %v346 = vld [vmem:[%s247 + $0x238] sm:$0xff]
      %v347 = vld [vmem:[%s247 + $0x240] sm:$0xff]
      %v348 = vld [vmem:[%s247 + $0x248] sm:$0xff]
      %v349 = vld [vmem:[%s247 + $0x250] sm:$0xff]
      %v350 = vld [vmem:[%s247 + $0x258] sm:$0xff]
      %v351 = vld [vmem:[%s247 + $0x260] sm:$0xff]
      %v352 = vld [vmem:[%s247 + $0x268] sm:$0xff]
      %v353 = vld [vmem:[%s247 + $0x270] sm:$0xff]
      %v354 = vld [vmem:[%s247 + $0x278] sm:$0xff]
      %v355 = vld [vmem:[%s247 + $0x280] sm:$0xff]
      %v356 = vld [vmem:[%s247 + $0x288] sm:$0xff]
      %v357 = vld [vmem:[%s247 + $0x290] sm:$0xff]
      %v358 = vld [vmem:[%s247 + $0x298] sm:$0xff]
      %v359 = vld [vmem:[%s254] sm:$0xff]
      %v360 = vld [vmem:[%s254 + $0x8] sm:$0xff]
      %v361 = vld [vmem:[%s254 + $0x10] sm:$0xff]
      %v362 = vld [vmem:[%s254 + $0x18] sm:$0xff]
      %v363 = vld [vmem:[%s254 + $0x20] sm:$0xff]
      %v364 = vld [vmem:[%s254 + $0x28] sm:$0xff]
      %v365 = vld [vmem:[%s254 + $0x30] sm:$0xff]
      %v366 = vld [vmem:[%s254 + $0x38] sm:$0xff]
      %v367 = vld [vmem:[%s254 + $0x40] sm:$0xff]
      %v368 = vld [vmem:[%s254 + $0x48] sm:$0xff]
      %v369 = vld [vmem:[%s254 + $0x50] sm:$0xff]
      %v370 = vld [vmem:[%s254 + $0x58] sm:$0xff]
      %v371 = vld [vmem:[%s254 + $0x60] sm:$0xff]
      %v372 = vld [vmem:[%s254 + $0x68] sm:$0xff]
      %v373 = vld [vmem:[%s254 + $0x70] sm:$0xff]
      %v374 = vld [vmem:[%s254 + $0x78] sm:$0xff]
      %v375 = vld [vmem:[%s254 + $0x80] sm:$0xff]
      %v376 = vld [vmem:[%s254 + $0x88] sm:$0xff]
      %v377 = vld [vmem:[%s254 + $0x90] sm:$0xff]
      %v378 = vld [vmem:[%s254 + $0x98] sm:$0xff]
      %v379 = vld [vmem:[%s254 + $0xa0] sm:$0xff]
      %v380 = vld [vmem:[%s254 + $0xa8] sm:$0xff]
      %v381 = vld [vmem:[%s254 + $0xb0] sm:$0xff]
      %v382 = vld [vmem:[%s254 + $0xb8] sm:$0xff]
      %v383 = vld [vmem:[%s254 + $0xc0] sm:$0xff]
      %v384 = vld [vmem:[%s254 + $0xc8] sm:$0xff]
      %v385 = vld [vmem:[%s254 + $0xd0] sm:$0xff]
      %v386 = vld [vmem:[%s254 + $0xd8] sm:$0xff]
      %v387 = vld [vmem:[%s254 + $0xe0] sm:$0xff]
      %v388 = vld [vmem:[%s254 + $0xe8] sm:$0xff]
      %v389 = vld [vmem:[%s254 + $0xf0] sm:$0xff]
      %v390 = vld [vmem:[%s254 + $0xf8] sm:$0xff]
      %v391 = vld [vmem:[%s254 + $0x100] sm:$0xff]
      %v392 = vld [vmem:[%s254 + $0x108] sm:$0xff]
      %v393 = vld [vmem:[%s254 + $0x110] sm:$0xff]
      %v394 = vld [vmem:[%s254 + $0x118] sm:$0xff]
      %v395 = vld [vmem:[%s254 + $0x120] sm:$0xff]
      %v396 = vld [vmem:[%s254 + $0x128] sm:$0xff]
      %v397 = vld [vmem:[%s254 + $0x130] sm:$0xff]
      %v398 = vld [vmem:[%s254 + $0x138] sm:$0xff]
      %v399 = vld [vmem:[%s254 + $0x140] sm:$0xff]
      %v400 = vld [vmem:[%s254 + $0x148] sm:$0xff]
      %v401 = vld [vmem:[%s254 + $0x150] sm:$0xff]
      %v402 = vld [vmem:[%s254 + $0x158] sm:$0xff]
      %v403 = vld [vmem:[%s254 + $0x160] sm:$0xff]
      %v404 = vld [vmem:[%s254 + $0x168] sm:$0xff]
      %v405 = vld [vmem:[%s254 + $0x170] sm:$0xff]
      %v406 = vld [vmem:[%s254 + $0x178] sm:$0xff]
      %v407 = vld [vmem:[%s254 + $0x180] sm:$0xff]
      %v408 = vld [vmem:[%s254 + $0x188] sm:$0xff]
      %v409 = vld [vmem:[%s254 + $0x190] sm:$0xff]
      %v410 = vld [vmem:[%s254 + $0x198] sm:$0xff]
      %v411 = vld [vmem:[%s254 + $0x1a0] sm:$0xff]
      %v412 = vld [vmem:[%s254 + $0x1a8] sm:$0xff]
      %v413 = vld [vmem:[%s254 + $0x1b0] sm:$0xff]
      %v414 = vld [vmem:[%s254 + $0x1b8] sm:$0xff]
      %v415 = vld [vmem:[%s254 + $0x1c0] sm:$0xff]
      %v416 = vld [vmem:[%s254 + $0x1c8] sm:$0xff]
      %v417 = vld [vmem:[%s254 + $0x1d0] sm:$0xff]
      %v418 = vld [vmem:[%s254 + $0x1d8] sm:$0xff]
      %v419 = vld [vmem:[%s254 + $0x1e0] sm:$0xff]
      %v420 = vld [vmem:[%s254 + $0x1e8] sm:$0xff]
      %v421 = vld [vmem:[%s254 + $0x1f0] sm:$0xff]
      %v422 = vld [vmem:[%s254 + $0x1f8] sm:$0xff]
      %v423 = vld [vmem:[%s254 + $0x200] sm:$0xff]
      %v424 = vld [vmem:[%s254 + $0x208] sm:$0xff]
      %v425 = vld [vmem:[%s254 + $0x210] sm:$0xff]
      %v426 = vld [vmem:[%s254 + $0x218] sm:$0xff]
      %v427 = vld [vmem:[%s254 + $0x220] sm:$0xff]
      %v428 = vld [vmem:[%s254 + $0x228] sm:$0xff]
      %v429 = vld [vmem:[%s254 + $0x230] sm:$0xff]
      %v430 = vld [vmem:[%s254 + $0x238] sm:$0xff]
      %v431 = vld [vmem:[%s254 + $0x240] sm:$0xff]
      %v432 = vld [vmem:[%s254 + $0x248] sm:$0xff]
      %v433 = vld [vmem:[%s254 + $0x250] sm:$0xff]
      %v434 = vld [vmem:[%s254 + $0x258] sm:$0xff]
      %v435 = vld [vmem:[%s254 + $0x260] sm:$0xff]
      %v436 = vld [vmem:[%s254 + $0x268] sm:$0xff]
      %v437 = vld [vmem:[%s254 + $0x270] sm:$0xff]
      %v438 = vld [vmem:[%s254 + $0x278] sm:$0xff]
      %v439 = vld [vmem:[%s254 + $0x280] sm:$0xff]
      %v440 = vld [vmem:[%s254 + $0x288] sm:$0xff]
      %v441 = vld [vmem:[%s254 + $0x290] sm:$0xff]
      %v442 = vld [vmem:[%s254 + $0x298] sm:$0xff]
      %vm443 = vcmask 556032
      %v444 = vsel %vm443, %v276, 0.0
      %v445 = vadd.f32 %v275, %v444
      %446 = vadd.xlane.f32.xlu0 %v445
      %v447 = vpop.xlane.xlu0 %446
      %v448 = vsel %vm443, %v278, 0.0
      %v449 = vadd.f32 %v277, %v448
      %450 = vadd.xlane.f32.xlu0 %v449
      %v451 = vpop.xlane.xlu0 %450
      %v452 = vsel %vm443, %v280, 0.0
      %v453 = vadd.f32 %v279, %v452
      %454 = vadd.xlane.f32.xlu0 %v453
      %v455 = vpop.xlane.xlu0 %454
      %v456 = vsel %vm443, %v282, 0.0
      %v457 = vadd.f32 %v281, %v456
      %458 = vadd.xlane.f32.xlu0 %v457
      %v459 = vpop.xlane.xlu0 %458
      %v460 = vsel %vm443, %v284, 0.0
      %v461 = vadd.f32 %v283, %v460
      %462 = vadd.xlane.f32.xlu0 %v461
      %v463 = vpop.xlane.xlu0 %462
      %v464 = vsel %vm443, %v286, 0.0
      %v465 = vadd.f32 %v285, %v464
      %466 = vadd.xlane.f32.xlu0 %v465
      %v467 = vpop.xlane.xlu0 %466
      %v468 = vsel %vm443, %v288, 0.0
      %v469 = vadd.f32 %v287, %v468
      %470 = vadd.xlane.f32.xlu0 %v469
      %v471 = vpop.xlane.xlu0 %470
      %v472 = vsel %vm443, %v290, 0.0
      %v473 = vadd.f32 %v289, %v472
      %474 = vadd.xlane.f32.xlu0 %v473
      %v475 = vpop.xlane.xlu0 %474
      %v476 = vsel %vm443, %v292, 0.0
      %v477 = vadd.f32 %v291, %v476
      %478 = vadd.xlane.f32.xlu0 %v477
      %v479 = vpop.xlane.xlu0 %478
      %v480 = vsel %vm443, %v294, 0.0
      %v481 = vadd.f32 %v293, %v480
      %482 = vadd.xlane.f32.xlu0 %v481
      %v483 = vpop.xlane.xlu0 %482
      %v484 = vsel %vm443, %v296, 0.0
      %v485 = vadd.f32 %v295, %v484
      %486 = vadd.xlane.f32.xlu0 %v485
      %v487 = vpop.xlane.xlu0 %486
      %v488 = vsel %vm443, %v298, 0.0
      %v489 = vadd.f32 %v297, %v488
      %490 = vadd.xlane.f32.xlu0 %v489
      %v491 = vpop.xlane.xlu0 %490
      %v492 = vsel %vm443, %v300, 0.0
      %v493 = vadd.f32 %v299, %v492
      %494 = vadd.xlane.f32.xlu0 %v493
      %v495 = vpop.xlane.xlu0 %494
      %v496 = vsel %vm443, %v302, 0.0
      %v497 = vadd.f32 %v301, %v496
      %498 = vadd.xlane.f32.xlu0 %v497
      %v499 = vpop.xlane.xlu0 %498
      %v500 = vsel %vm443, %v304, 0.0
      %v501 = vadd.f32 %v303, %v500
      %502 = vadd.xlane.f32.xlu0 %v501
      %v503 = vpop.xlane.xlu0 %502
      %v504 = vsel %vm443, %v306, 0.0
      %v505 = vadd.f32 %v305, %v504
      %506 = vadd.xlane.f32.xlu0 %v505
      %v507 = vpop.xlane.xlu0 %506
      %v508 = vsel %vm443, %v308, 0.0
      %v509 = vadd.f32 %v307, %v508
      %510 = vadd.xlane.f32.xlu0 %v509
      %v511 = vpop.xlane.xlu0 %510
      %v512 = vsel %vm443, %v310, 0.0
      %v513 = vadd.f32 %v309, %v512
      %514 = vadd.xlane.f32.xlu0 %v513
      %v515 = vpop.xlane.xlu0 %514
      %v516 = vsel %vm443, %v312, 0.0
      %v517 = vadd.f32 %v311, %v516
      %518 = vadd.xlane.f32.xlu0 %v517
      %v519 = vpop.xlane.xlu0 %518
      %v520 = vsel %vm443, %v314, 0.0
      %v521 = vadd.f32 %v313, %v520
      %522 = vadd.xlane.f32.xlu0 %v521
      %v523 = vpop.xlane.xlu0 %522
      %v524 = vsel %vm443, %v316, 0.0
      %v525 = vadd.f32 %v315, %v524
      %526 = vadd.xlane.f32.xlu0 %v525
      %v527 = vpop.xlane.xlu0 %526
      %v528 = vsel %vm443, %v318, 0.0
      %v529 = vadd.f32 %v317, %v528
      %530 = vadd.xlane.f32.xlu0 %v529
      %v531 = vpop.xlane.xlu0 %530
      %v532 = vsel %vm443, %v320, 0.0
      %v533 = vadd.f32 %v319, %v532
      %534 = vadd.xlane.f32.xlu0 %v533
      %v535 = vpop.xlane.xlu0 %534
      %v536 = vsel %vm443, %v322, 0.0
      %v537 = vadd.f32 %v321, %v536
      %538 = vadd.xlane.f32.xlu0 %v537
      %v539 = vpop.xlane.xlu0 %538
      %v540 = vsel %vm443, %v324, 0.0
      %v541 = vadd.f32 %v323, %v540
      %542 = vadd.xlane.f32.xlu0 %v541
      %v543 = vpop.xlane.xlu0 %542
      %v544 = vsel %vm443, %v326, 0.0
      %v545 = vadd.f32 %v325, %v544
      %546 = vadd.xlane.f32.xlu0 %v545
      %v547 = vpop.xlane.xlu0 %546
      %v548 = vsel %vm443, %v328, 0.0
      %v549 = vadd.f32 %v327, %v548
      %550 = vadd.xlane.f32.xlu0 %v549
      %v551 = vpop.xlane.xlu0 %550
      %v552 = vsel %vm443, %v330, 0.0
      %v553 = vadd.f32 %v329, %v552
      %554 = vadd.xlane.f32.xlu0 %v553
      %v555 = vpop.xlane.xlu0 %554
      %v556 = vsel %vm443, %v332, 0.0
      %v557 = vadd.f32 %v331, %v556
      %558 = vadd.xlane.f32.xlu0 %v557
      %v559 = vpop.xlane.xlu0 %558
      %v560 = vsel %vm443, %v334, 0.0
      %v561 = vadd.f32 %v333, %v560
      %562 = vadd.xlane.f32.xlu0 %v561
      %v563 = vpop.xlane.xlu0 %562
      %v564 = vsel %vm443, %v336, 0.0
      %v565 = vadd.f32 %v335, %v564
      %566 = vadd.xlane.f32.xlu0 %v565
      %v567 = vpop.xlane.xlu0 %566
      %v568 = vsel %vm443, %v338, 0.0
      %v569 = vadd.f32 %v337, %v568
      %570 = vadd.xlane.f32.xlu0 %v569
      %v571 = vpop.xlane.xlu0 %570
      %v572 = vsel %vm443, %v340, 0.0
      %v573 = vadd.f32 %v339, %v572
      %574 = vadd.xlane.f32.xlu0 %v573
      %v575 = vpop.xlane.xlu0 %574
      %v576 = vsel %vm443, %v342, 0.0
      %v577 = vadd.f32 %v341, %v576
      %578 = vadd.xlane.f32.xlu0 %v577
      %v579 = vpop.xlane.xlu0 %578
      %v580 = vsel %vm443, %v344, 0.0
      %v581 = vadd.f32 %v343, %v580
      %582 = vadd.xlane.f32.xlu0 %v581
      %v583 = vpop.xlane.xlu0 %582
      %v584 = vsel %vm443, %v346, 0.0
      %v585 = vadd.f32 %v345, %v584
      %586 = vadd.xlane.f32.xlu0 %v585
      %v587 = vpop.xlane.xlu0 %586
      %v588 = vsel %vm443, %v348, 0.0
      %v589 = vadd.f32 %v347, %v588
      %590 = vadd.xlane.f32.xlu0 %v589
      %v591 = vpop.xlane.xlu0 %590
      %v592 = vsel %vm443, %v350, 0.0
      %v593 = vadd.f32 %v349, %v592
      %594 = vadd.xlane.f32.xlu0 %v593
      %v595 = vpop.xlane.xlu0 %594
      %v596 = vsel %vm443, %v352, 0.0
      %v597 = vadd.f32 %v351, %v596
      %598 = vadd.xlane.f32.xlu0 %v597
      %v599 = vpop.xlane.xlu0 %598
      %v600 = vsel %vm443, %v354, 0.0
      %v601 = vadd.f32 %v353, %v600
      %602 = vadd.xlane.f32.xlu0 %v601
      %v603 = vpop.xlane.xlu0 %602
      %v604 = vsel %vm443, %v356, 0.0
      %v605 = vadd.f32 %v355, %v604
      %606 = vadd.xlane.f32.xlu0 %v605
      %v607 = vpop.xlane.xlu0 %606
      %v608 = vsel %vm443, %v358, 0.0
      %v609 = vadd.f32 %v357, %v608
      %610 = vadd.xlane.f32.xlu0 %v609
      %v611 = vpop.xlane.xlu0 %610
      %v612 = vmul.f32 %v447, 0.0051020407
      %v613 = vmul.f32 %v451, 0.0051020407
      %v614 = vmul.f32 %v455, 0.0051020407
      %v615 = vmul.f32 %v459, 0.0051020407
      %v616 = vmul.f32 %v463, 0.0051020407
      %v617 = vmul.f32 %v467, 0.0051020407
      %v618 = vmul.f32 %v471, 0.0051020407
      %v619 = vmul.f32 %v475, 0.0051020407
      %v620 = vmul.f32 %v479, 0.0051020407
      %v621 = vmul.f32 %v483, 0.0051020407
      %v622 = vmul.f32 %v487, 0.0051020407
      %v623 = vmul.f32 %v491, 0.0051020407
      %v624 = vmul.f32 %v495, 0.0051020407
      %v625 = vmul.f32 %v499, 0.0051020407
      %v626 = vmul.f32 %v503, 0.0051020407
      %v627 = vmul.f32 %v507, 0.0051020407
      %v628 = vmul.f32 %v511, 0.0051020407
      %v629 = vmul.f32 %v515, 0.0051020407
      %v630 = vmul.f32 %v519, 0.0051020407
      %v631 = vmul.f32 %v523, 0.0051020407
      %v632 = vmul.f32 %v527, 0.0051020407
      %v633 = vmul.f32 %v531, 0.0051020407
      %v634 = vmul.f32 %v535, 0.0051020407
      %v635 = vmul.f32 %v539, 0.0051020407
      %v636 = vmul.f32 %v543, 0.0051020407
      %v637 = vmul.f32 %v547, 0.0051020407
      %v638 = vmul.f32 %v551, 0.0051020407
      %v639 = vmul.f32 %v555, 0.0051020407
      %v640 = vmul.f32 %v559, 0.0051020407
      %v641 = vmul.f32 %v563, 0.0051020407
      %v642 = vmul.f32 %v567, 0.0051020407
      %v643 = vmul.f32 %v571, 0.0051020407
      %v644 = vmul.f32 %v575, 0.0051020407
      %v645 = vmul.f32 %v579, 0.0051020407
      %v646 = vmul.f32 %v583, 0.0051020407
      %v647 = vmul.f32 %v587, 0.0051020407
      %v648 = vmul.f32 %v591, 0.0051020407
      %v649 = vmul.f32 %v595, 0.0051020407
      %v650 = vmul.f32 %v599, 0.0051020407
      %v651 = vmul.f32 %v603, 0.0051020407
      %v652 = vmul.f32 %v607, 0.0051020407
      %v653 = vmul.f32 %v611, 0.0051020407
      %v654 = vsub.f32 %v275, %v612
      %v655 = vsub.f32 %v276, %v612
      %v656 = vsub.f32 %v277, %v613
      %v657 = vsub.f32 %v278, %v613
      %v658 = vsub.f32 %v279, %v614
      %v659 = vsub.f32 %v280, %v614
      %v660 = vsub.f32 %v281, %v615
      %v661 = vsub.f32 %v282, %v615
      %v662 = vsub.f32 %v283, %v616
      %v663 = vsub.f32 %v284, %v616
      %v664 = vsub.f32 %v285, %v617
      %v665 = vsub.f32 %v286, %v617
      %v666 = vsub.f32 %v287, %v618
      %v667 = vsub.f32 %v288, %v618
      %v668 = vsub.f32 %v289, %v619
      %v669 = vsub.f32 %v290, %v619
      %v670 = vsub.f32 %v291, %v620
      %v671 = vsub.f32 %v292, %v620
      %v672 = vsub.f32 %v293, %v621
      %v673 = vsub.f32 %v294, %v621
      %v674 = vsub.f32 %v295, %v622
      %v675 = vsub.f32 %v296, %v622
      %v676 = vsub.f32 %v297, %v623
      %v677 = vsub.f32 %v298, %v623
      %v678 = vsub.f32 %v299, %v624
      %v679 = vsub.f32 %v300, %v624
      %v680 = vsub.f32 %v301, %v625
      %v681 = vsub.f32 %v302, %v625
      %v682 = vsub.f32 %v303, %v626
      %v683 = vsub.f32 %v304, %v626
      %v684 = vsub.f32 %v305, %v627
      %v685 = vsub.f32 %v306, %v627
      %v686 = vsub.f32 %v307, %v628
      %v687 = vsub.f32 %v308, %v628
      %v688 = vsub.f32 %v309, %v629
      %v689 = vsub.f32 %v310, %v629
      %v690 = vsub.f32 %v311, %v630
      %v691 = vsub.f32 %v312, %v630
      %v692 = vsub.f32 %v313, %v631
      %v693 = vsub.f32 %v314, %v631
      %v694 = vsub.f32 %v315, %v632
      %v695 = vsub.f32 %v316, %v632
      %v696 = vsub.f32 %v317, %v633
      %v697 = vsub.f32 %v318, %v633
      %v698 = vsub.f32 %v319, %v634
      %v699 = vsub.f32 %v320, %v634
      %v700 = vsub.f32 %v321, %v635
      %v701 = vsub.f32 %v322, %v635
      %v702 = vsub.f32 %v323, %v636
      %v703 = vsub.f32 %v324, %v636
      %v704 = vsub.f32 %v325, %v637
      %v705 = vsub.f32 %v326, %v637
      %v706 = vsub.f32 %v327, %v638
      %v707 = vsub.f32 %v328, %v638
      %v708 = vsub.f32 %v329, %v639
      %v709 = vsub.f32 %v330, %v639
      %v710 = vsub.f32 %v331, %v640
      %v711 = vsub.f32 %v332, %v640
      %v712 = vsub.f32 %v333, %v641
      %v713 = vsub.f32 %v334, %v641
      %v714 = vsub.f32 %v335, %v642
      %v715 = vsub.f32 %v336, %v642
      %v716 = vsub.f32 %v337, %v643
      %v717 = vsub.f32 %v338, %v643
      %v718 = vsub.f32 %v339, %v644
      %v719 = vsub.f32 %v340, %v644
      %v720 = vsub.f32 %v341, %v645
      %v721 = vsub.f32 %v342, %v645
      %v722 = vsub.f32 %v343, %v646
      %v723 = vsub.f32 %v344, %v646
      %v724 = vsub.f32 %v345, %v647
      %v725 = vsub.f32 %v346, %v647
      %v726 = vsub.f32 %v347, %v648
      %v727 = vsub.f32 %v348, %v648
      %v728 = vsub.f32 %v349, %v649
      %v729 = vsub.f32 %v350, %v649
      %v730 = vsub.f32 %v351, %v650
      %v731 = vsub.f32 %v352, %v650
      %v732 = vsub.f32 %v353, %v651
      %v733 = vsub.f32 %v354, %v651
      %v734 = vsub.f32 %v355, %v652
      %v735 = vsub.f32 %v356, %v652
      %v736 = vsub.f32 %v357, %v653
      %v737 = vsub.f32 %v358, %v653
      %v738 = vmul.f32 %v654, %v654
      %v739 = vmul.f32 %v655, %v655
      %v740 = vmul.f32 %v656, %v656
      %v741 = vmul.f32 %v657, %v657
      %v742 = vmul.f32 %v658, %v658
      %v743 = vmul.f32 %v659, %v659
      %v744 = vmul.f32 %v660, %v660
      %v745 = vmul.f32 %v661, %v661
      %v746 = vmul.f32 %v662, %v662
      %v747 = vmul.f32 %v663, %v663
      %v748 = vmul.f32 %v664, %v664
      %v749 = vmul.f32 %v665, %v665
      %v750 = vmul.f32 %v666, %v666
      %v751 = vmul.f32 %v667, %v667
      %v752 = vmul.f32 %v668, %v668
      %v753 = vmul.f32 %v669, %v669
      %v754 = vmul.f32 %v670, %v670
      %v755 = vmul.f32 %v671, %v671
      %v756 = vmul.f32 %v672, %v672
      %v757 = vmul.f32 %v673, %v673
      %v758 = vmul.f32 %v674, %v674
      %v759 = vmul.f32 %v675, %v675
      %v760 = vmul.f32 %v676, %v676
      %v761 = vmul.f32 %v677, %v677
      %v762 = vmul.f32 %v678, %v678
      %v763 = vmul.f32 %v679, %v679
      %v764 = vmul.f32 %v680, %v680
      %v765 = vmul.f32 %v681, %v681
      %v766 = vmul.f32 %v682, %v682
      %v767 = vmul.f32 %v683, %v683
      %v768 = vmul.f32 %v684, %v684
      %v769 = vmul.f32 %v685, %v685
      %v770 = vmul.f32 %v686, %v686
      %v771 = vmul.f32 %v687, %v687
      %v772 = vmul.f32 %v688, %v688
      %v773 = vmul.f32 %v689, %v689
      %v774 = vmul.f32 %v690, %v690
      %v775 = vmul.f32 %v691, %v691
      %v776 = vmul.f32 %v692, %v692
      %v777 = vmul.f32 %v693, %v693
      %v778 = vmul.f32 %v694, %v694
      %v779 = vmul.f32 %v695, %v695
      %v780 = vmul.f32 %v696, %v696
      %v781 = vmul.f32 %v697, %v697
      %v782 = vmul.f32 %v698, %v698
      %v783 = vmul.f32 %v699, %v699
      %v784 = vmul.f32 %v700, %v700
      %v785 = vmul.f32 %v701, %v701
      %v786 = vmul.f32 %v702, %v702
      %v787 = vmul.f32 %v703, %v703
      %v788 = vmul.f32 %v704, %v704
      %v789 = vmul.f32 %v705, %v705
      %v790 = vmul.f32 %v706, %v706
      %v791 = vmul.f32 %v707, %v707
      %v792 = vmul.f32 %v708, %v708
      %v793 = vmul.f32 %v709, %v709
      %v794 = vmul.f32 %v710, %v710
      %v795 = vmul.f32 %v711, %v711
      %v796 = vmul.f32 %v712, %v712
      %v797 = vmul.f32 %v713, %v713
      %v798 = vmul.f32 %v714, %v714
      %v799 = vmul.f32 %v715, %v715
      %v800 = vmul.f32 %v716, %v716
      %v801 = vmul.f32 %v717, %v717
      %v802 = vmul.f32 %v718, %v718
      %v803 = vmul.f32 %v719, %v719
      %v804 = vmul.f32 %v720, %v720
      %v805 = vmul.f32 %v721, %v721
      %v806 = vmul.f32 %v722, %v722
      %v807 = vmul.f32 %v723, %v723
      %v808 = vmul.f32 %v724, %v724
      %v809 = vmul.f32 %v725, %v725
      %v810 = vmul.f32 %v726, %v726
      %v811 = vmul.f32 %v727, %v727
      %v812 = vmul.f32 %v728, %v728
      %v813 = vmul.f32 %v729, %v729
      %v814 = vmul.f32 %v730, %v730
      %v815 = vmul.f32 %v731, %v731
      %v816 = vmul.f32 %v732, %v732
      %v817 = vmul.f32 %v733, %v733
      %v818 = vmul.f32 %v734, %v734
      %v819 = vmul.f32 %v735, %v735
      %v820 = vmul.f32 %v736, %v736
      %v821 = vmul.f32 %v737, %v737
      %v822 = vsel %vm443, %v739, 0.0
      %v823 = vadd.f32 %v738, %v822
      %824 = vadd.xlane.f32.xlu0 %v823
      %v825 = vpop.xlane.xlu0 %824
      %v826 = vsel %vm443, %v741, 0.0
      %v827 = vadd.f32 %v740, %v826
      %828 = vadd.xlane.f32.xlu0 %v827
      %v829 = vpop.xlane.xlu0 %828
      %v830 = vsel %vm443, %v743, 0.0
      %v831 = vadd.f32 %v742, %v830
      %832 = vadd.xlane.f32.xlu0 %v831
      %v833 = vpop.xlane.xlu0 %832
      %v834 = vsel %vm443, %v745, 0.0
      %v835 = vadd.f32 %v744, %v834
      %836 = vadd.xlane.f32.xlu0 %v835
      %v837 = vpop.xlane.xlu0 %836
      %v838 = vsel %vm443, %v747, 0.0
      %v839 = vadd.f32 %v746, %v838
      %840 = vadd.xlane.f32.xlu0 %v839
      %v841 = vpop.xlane.xlu0 %840
      %v842 = vsel %vm443, %v749, 0.0
      %v843 = vadd.f32 %v748, %v842
      %844 = vadd.xlane.f32.xlu0 %v843
      %v845 = vpop.xlane.xlu0 %844
      %v846 = vsel %vm443, %v751, 0.0
      %v847 = vadd.f32 %v750, %v846
      %848 = vadd.xlane.f32.xlu0 %v847
      %v849 = vpop.xlane.xlu0 %848
      %v850 = vsel %vm443, %v753, 0.0
      %v851 = vadd.f32 %v752, %v850
      %852 = vadd.xlane.f32.xlu0 %v851
      %v853 = vpop.xlane.xlu0 %852
      %v854 = vsel %vm443, %v755, 0.0
      %v855 = vadd.f32 %v754, %v854
      %856 = vadd.xlane.f32.xlu0 %v855
      %v857 = vpop.xlane.xlu0 %856
      %v858 = vsel %vm443, %v757, 0.0
      %v859 = vadd.f32 %v756, %v858
      %860 = vadd.xlane.f32.xlu0 %v859
      %v861 = vpop.xlane.xlu0 %860
      %v862 = vsel %vm443, %v759, 0.0
      %v863 = vadd.f32 %v758, %v862
      %864 = vadd.xlane.f32.xlu0 %v863
      %v865 = vpop.xlane.xlu0 %864
      %v866 = vsel %vm443, %v761, 0.0
      %v867 = vadd.f32 %v760, %v866
      %868 = vadd.xlane.f32.xlu0 %v867
      %v869 = vpop.xlane.xlu0 %868
      %v870 = vsel %vm443, %v763, 0.0
      %v871 = vadd.f32 %v762, %v870
      %872 = vadd.xlane.f32.xlu0 %v871
      %v873 = vpop.xlane.xlu0 %872
      %v874 = vsel %vm443, %v765, 0.0
      %v875 = vadd.f32 %v764, %v874
      %876 = vadd.xlane.f32.xlu0 %v875
      %v877 = vpop.xlane.xlu0 %876
      %v878 = vsel %vm443, %v767, 0.0
      %v879 = vadd.f32 %v766, %v878
      %880 = vadd.xlane.f32.xlu0 %v879
      %v881 = vpop.xlane.xlu0 %880
      %v882 = vsel %vm443, %v769, 0.0
      %v883 = vadd.f32 %v768, %v882
      %884 = vadd.xlane.f32.xlu0 %v883
      %v885 = vpop.xlane.xlu0 %884
      %v886 = vsel %vm443, %v771, 0.0
      %v887 = vadd.f32 %v770, %v886
      %888 = vadd.xlane.f32.xlu0 %v887
      %v889 = vpop.xlane.xlu0 %888
      %v890 = vsel %vm443, %v773, 0.0
      %v891 = vadd.f32 %v772, %v890
      %892 = vadd.xlane.f32.xlu0 %v891
      %v893 = vpop.xlane.xlu0 %892
      %v894 = vsel %vm443, %v775, 0.0
      %v895 = vadd.f32 %v774, %v894
      %896 = vadd.xlane.f32.xlu0 %v895
      %v897 = vpop.xlane.xlu0 %896
      %v898 = vsel %vm443, %v777, 0.0
      %v899 = vadd.f32 %v776, %v898
      %900 = vadd.xlane.f32.xlu0 %v899
      %v901 = vpop.xlane.xlu0 %900
      %v902 = vsel %vm443, %v779, 0.0
      %v903 = vadd.f32 %v778, %v902
      %904 = vadd.xlane.f32.xlu0 %v903
      %v905 = vpop.xlane.xlu0 %904
      %v906 = vsel %vm443, %v781, 0.0
      %v907 = vadd.f32 %v780, %v906
      %908 = vadd.xlane.f32.xlu0 %v907
      %v909 = vpop.xlane.xlu0 %908
      %v910 = vsel %vm443, %v783, 0.0
      %v911 = vadd.f32 %v782, %v910
      %912 = vadd.xlane.f32.xlu0 %v911
      %v913 = vpop.xlane.xlu0 %912
      %v914 = vsel %vm443, %v785, 0.0
      %v915 = vadd.f32 %v784, %v914
      %916 = vadd.xlane.f32.xlu0 %v915
      %v917 = vpop.xlane.xlu0 %916
      %v918 = vsel %vm443, %v787, 0.0
      %v919 = vadd.f32 %v786, %v918
      %920 = vadd.xlane.f32.xlu0 %v919
      %v921 = vpop.xlane.xlu0 %920
      %v922 = vsel %vm443, %v789, 0.0
      %v923 = vadd.f32 %v788, %v922
      %924 = vadd.xlane.f32.xlu0 %v923
      %v925 = vpop.xlane.xlu0 %924
      %v926 = vsel %vm443, %v791, 0.0
      %v927 = vadd.f32 %v790, %v926
      %928 = vadd.xlane.f32.xlu0 %v927
      %v929 = vpop.xlane.xlu0 %928
      %v930 = vsel %vm443, %v793, 0.0
      %v931 = vadd.f32 %v792, %v930
      %932 = vadd.xlane.f32.xlu0 %v931
      %v933 = vpop.xlane.xlu0 %932
      %v934 = vsel %vm443, %v795, 0.0
      %v935 = vadd.f32 %v794, %v934
      %936 = vadd.xlane.f32.xlu0 %v935
      %v937 = vpop.xlane.xlu0 %936
      %v938 = vsel %vm443, %v797, 0.0
      %v939 = vadd.f32 %v796, %v938
      %940 = vadd.xlane.f32.xlu0 %v939
      %v941 = vpop.xlane.xlu0 %940
      %v942 = vsel %vm443, %v799, 0.0
      %v943 = vadd.f32 %v798, %v942
      %944 = vadd.xlane.f32.xlu0 %v943
      %v945 = vpop.xlane.xlu0 %944
      %v946 = vsel %vm443, %v801, 0.0
      %v947 = vadd.f32 %v800, %v946
      %948 = vadd.xlane.f32.xlu0 %v947
      %v949 = vpop.xlane.xlu0 %948
      %v950 = vsel %vm443, %v803, 0.0
      %v951 = vadd.f32 %v802, %v950
      %952 = vadd.xlane.f32.xlu0 %v951
      %v953 = vpop.xlane.xlu0 %952
      %v954 = vsel %vm443, %v805, 0.0
      %v955 = vadd.f32 %v804, %v954
      %956 = vadd.xlane.f32.xlu0 %v955
      %v957 = vpop.xlane.xlu0 %956
      %v958 = vsel %vm443, %v807, 0.0
      %v959 = vadd.f32 %v806, %v958
      %960 = vadd.xlane.f32.xlu0 %v959
      %v961 = vpop.xlane.xlu0 %960
      %v962 = vsel %vm443, %v809, 0.0
      %v963 = vadd.f32 %v808, %v962
      %964 = vadd.xlane.f32.xlu0 %v963
      %v965 = vpop.xlane.xlu0 %964
      %v966 = vsel %vm443, %v811, 0.0
      %v967 = vadd.f32 %v810, %v966
      %968 = vadd.xlane.f32.xlu0 %v967
      %v969 = vpop.xlane.xlu0 %968
      %v970 = vsel %vm443, %v813, 0.0
      %v971 = vadd.f32 %v812, %v970
      %972 = vadd.xlane.f32.xlu0 %v971
      %v973 = vpop.xlane.xlu0 %972
      %v974 = vsel %vm443, %v815, 0.0
      %v975 = vadd.f32 %v814, %v974
      %976 = vadd.xlane.f32.xlu0 %v975
      %v977 = vpop.xlane.xlu0 %976
      %v978 = vsel %vm443, %v817, 0.0
      %v979 = vadd.f32 %v816, %v978
      %980 = vadd.xlane.f32.xlu0 %v979
      %v981 = vpop.xlane.xlu0 %980
      %v982 = vsel %vm443, %v819, 0.0
      %v983 = vadd.f32 %v818, %v982
      %984 = vadd.xlane.f32.xlu0 %v983
      %v985 = vpop.xlane.xlu0 %984
      %v986 = vsel %vm443, %v821, 0.0
      %v987 = vadd.f32 %v820, %v986
      %988 = vadd.xlane.f32.xlu0 %v987
      %v989 = vpop.xlane.xlu0 %988
      %v990 = vmul.f32 %v825, 0.0051020407
      %v991 = vmul.f32 %v829, 0.0051020407
      %v992 = vmul.f32 %v833, 0.0051020407
      %v993 = vmul.f32 %v837, 0.0051020407
      %v994 = vmul.f32 %v841, 0.0051020407
      %v995 = vmul.f32 %v845, 0.0051020407
      %v996 = vmul.f32 %v849, 0.0051020407
      %v997 = vmul.f32 %v853, 0.0051020407
      %v998 = vmul.f32 %v857, 0.0051020407
      %v999 = vmul.f32 %v861, 0.0051020407
      %v1000 = vmul.f32 %v865, 0.0051020407
      %v1001 = vmul.f32 %v869, 0.0051020407
      %v1002 = vmul.f32 %v873, 0.0051020407
      %v1003 = vmul.f32 %v877, 0.0051020407
      %v1004 = vmul.f32 %v881, 0.0051020407
      %v1005 = vmul.f32 %v885, 0.0051020407
      %v1006 = vmul.f32 %v889, 0.0051020407
      %v1007 = vmul.f32 %v893, 0.0051020407
      %v1008 = vmul.f32 %v897, 0.0051020407
      %v1009 = vmul.f32 %v901, 0.0051020407
      %v1010 = vmul.f32 %v905, 0.0051020407
      %v1011 = vmul.f32 %v909, 0.0051020407
      %v1012 = vmul.f32 %v913, 0.0051020407
      %v1013 = vmul.f32 %v917, 0.0051020407
      %v1014 = vmul.f32 %v921, 0.0051020407
      %v1015 = vmul.f32 %v925, 0.0051020407
      %v1016 = vmul.f32 %v929, 0.0051020407
      %v1017 = vmul.f32 %v933, 0.0051020407
      %v1018 = vmul.f32 %v937, 0.0051020407
      %v1019 = vmul.f32 %v941, 0.0051020407
      %v1020 = vmul.f32 %v945, 0.0051020407
      %v1021 = vmul.f32 %v949, 0.0051020407
      %v1022 = vmul.f32 %v953, 0.0051020407
      %v1023 = vmul.f32 %v957, 0.0051020407
      %v1024 = vmul.f32 %v961, 0.0051020407
      %v1025 = vmul.f32 %v965, 0.0051020407
      %v1026 = vmul.f32 %v969, 0.0051020407
      %v1027 = vmul.f32 %v973, 0.0051020407
      %v1028 = vmul.f32 %v977, 0.0051020407
      %v1029 = vmul.f32 %v981, 0.0051020407
      %v1030 = vmul.f32 %v985, 0.0051020407
      %v1031 = vmul.f32 %v989, 0.0051020407
      %v1032 = vadd.f32 %v990, 1e-05
      %v1033 = vadd.f32 %v991, 1e-05
      %v1034 = vadd.f32 %v992, 1e-05
      %v1035 = vadd.f32 %v993, 1e-05
      %v1036 = vadd.f32 %v994, 1e-05
      %v1037 = vadd.f32 %v995, 1e-05
      %v1038 = vadd.f32 %v996, 1e-05
      %v1039 = vadd.f32 %v997, 1e-05
      %v1040 = vadd.f32 %v998, 1e-05
      %v1041 = vadd.f32 %v999, 1e-05
      %v1042 = vadd.f32 %v1000, 1e-05
      %v1043 = vadd.f32 %v1001, 1e-05
      %v1044 = vadd.f32 %v1002, 1e-05
      %v1045 = vadd.f32 %v1003, 1e-05
      %v1046 = vadd.f32 %v1004, 1e-05
      %v1047 = vadd.f32 %v1005, 1e-05
      %v1048 = vadd.f32 %v1006, 1e-05
      %v1049 = vadd.f32 %v1007, 1e-05
      %v1050 = vadd.f32 %v1008, 1e-05
      %v1051 = vadd.f32 %v1009, 1e-05
      %v1052 = vadd.f32 %v1010, 1e-05
      %v1053 = vadd.f32 %v1011, 1e-05
      %v1054 = vadd.f32 %v1012, 1e-05
      %v1055 = vadd.f32 %v1013, 1e-05
      %v1056 = vadd.f32 %v1014, 1e-05
      %v1057 = vadd.f32 %v1015, 1e-05
      %v1058 = vadd.f32 %v1016, 1e-05
      %v1059 = vadd.f32 %v1017, 1e-05
      %v1060 = vadd.f32 %v1018, 1e-05
      %v1061 = vadd.f32 %v1019, 1e-05
      %v1062 = vadd.f32 %v1020, 1e-05
      %v1063 = vadd.f32 %v1021, 1e-05
      %v1064 = vadd.f32 %v1022, 1e-05
      %v1065 = vadd.f32 %v1023, 1e-05
      %v1066 = vadd.f32 %v1024, 1e-05
      %v1067 = vadd.f32 %v1025, 1e-05
      %v1068 = vadd.f32 %v1026, 1e-05
      %v1069 = vadd.f32 %v1027, 1e-05
      %v1070 = vadd.f32 %v1028, 1e-05
      %v1071 = vadd.f32 %v1029, 1e-05
      %v1072 = vadd.f32 %v1030, 1e-05
      %v1073 = vadd.f32 %v1031, 1e-05
      %v1074 = vrsqrt.pop %v1032
      %v1075 = vrsqrt.pop %v1033
      %v1076 = vrsqrt.pop %v1034
      %v1077 = vrsqrt.pop %v1035
      %v1078 = vrsqrt.pop %v1036
      %v1079 = vrsqrt.pop %v1037
      %v1080 = vrsqrt.pop %v1038
      %v1081 = vrsqrt.pop %v1039
      %v1082 = vrsqrt.pop %v1040
      %v1083 = vrsqrt.pop %v1041
      %v1084 = vrsqrt.pop %v1042
      %v1085 = vrsqrt.pop %v1043
      %v1086 = vrsqrt.pop %v1044
      %v1087 = vrsqrt.pop %v1045
      %v1088 = vrsqrt.pop %v1046
      %v1089 = vrsqrt.pop %v1047
      %v1090 = vrsqrt.pop %v1048
      %v1091 = vrsqrt.pop %v1049
      %v1092 = vrsqrt.pop %v1050
      %v1093 = vrsqrt.pop %v1051
      %v1094 = vrsqrt.pop %v1052
      %v1095 = vrsqrt.pop %v1053
      %v1096 = vrsqrt.pop %v1054
      %v1097 = vrsqrt.pop %v1055
      %v1098 = vrsqrt.pop %v1056
      %v1099 = vrsqrt.pop %v1057
      %v1100 = vrsqrt.pop %v1058
      %v1101 = vrsqrt.pop %v1059
      %v1102 = vrsqrt.pop %v1060
      %v1103 = vrsqrt.pop %v1061
      %v1104 = vrsqrt.pop %v1062
      %v1105 = vrsqrt.pop %v1063
      %v1106 = vrsqrt.pop %v1064
      %v1107 = vrsqrt.pop %v1065
      %v1108 = vrsqrt.pop %v1066
      %v1109 = vrsqrt.pop %v1067
      %v1110 = vrsqrt.pop %v1068
      %v1111 = vrsqrt.pop %v1069
      %v1112 = vrsqrt.pop %v1070
      %v1113 = vrsqrt.pop %v1071
      %v1114 = vrsqrt.pop %v1072
      %v1115 = vrsqrt.pop %v1073
      %v1116 = vld [vmem:[%s260] sm:$0xff]
      %v1117 = vld [vmem:[%s260 + $0x8] sm:$0xff]
      %v1118 = vld [vmem:[%s260 + $0x10] sm:$0xff]
      %v1119 = vld [vmem:[%s260 + $0x18] sm:$0xff]
      %v1120 = vld [vmem:[%s260 + $0x20] sm:$0xff]
      %v1121 = vld [vmem:[%s260 + $0x28] sm:$0xff]
      %v1122 = vld [vmem:[%s260 + $0x30] sm:$0xff]
      %v1123 = vld [vmem:[%s260 + $0x38] sm:$0xff]
      %v1124 = vld [vmem:[%s260 + $0x40] sm:$0xff]
      %v1125 = vld [vmem:[%s260 + $0x48] sm:$0xff]
      %v1126 = vld [vmem:[%s260 + $0x50] sm:$0xff]
      %v1127 = vld [vmem:[%s260 + $0x58] sm:$0xff]
      %v1128 = vld [vmem:[%s260 + $0x60] sm:$0xff]
      %v1129 = vld [vmem:[%s260 + $0x68] sm:$0xff]
      %v1130 = vld [vmem:[%s260 + $0x70] sm:$0xff]
      %v1131 = vld [vmem:[%s260 + $0x78] sm:$0xff]
      %v1132 = vld [vmem:[%s260 + $0x80] sm:$0xff]
      %v1133 = vld [vmem:[%s260 + $0x88] sm:$0xff]
      %v1134 = vld [vmem:[%s260 + $0x90] sm:$0xff]
      %v1135 = vld [vmem:[%s260 + $0x98] sm:$0xff]
      %v1136 = vld [vmem:[%s260 + $0xa0] sm:$0xff]
      %v1137 = vld [vmem:[%s260 + $0xa8] sm:$0xff]
      %v1138 = vld [vmem:[%s260 + $0xb0] sm:$0xff]
      %v1139 = vld [vmem:[%s260 + $0xb8] sm:$0xff]
      %v1140 = vld [vmem:[%s260 + $0xc0] sm:$0xff]
      %v1141 = vld [vmem:[%s260 + $0xc8] sm:$0xff]
      %v1142 = vld [vmem:[%s260 + $0xd0] sm:$0xff]
      %v1143 = vld [vmem:[%s260 + $0xd8] sm:$0xff]
      %v1144 = vld [vmem:[%s260 + $0xe0] sm:$0xff]
      %v1145 = vld [vmem:[%s260 + $0xe8] sm:$0xff]
      %v1146 = vld [vmem:[%s260 + $0xf0] sm:$0xff]
      %v1147 = vld [vmem:[%s260 + $0xf8] sm:$0xff]
      %v1148 = vld [vmem:[%s260 + $0x100] sm:$0xff]
      %v1149 = vld [vmem:[%s260 + $0x108] sm:$0xff]
      %v1150 = vld [vmem:[%s260 + $0x110] sm:$0xff]
      %v1151 = vld [vmem:[%s260 + $0x118] sm:$0xff]
      %v1152 = vld [vmem:[%s260 + $0x120] sm:$0xff]
      %v1153 = vld [vmem:[%s260 + $0x128] sm:$0xff]
      %v1154 = vld [vmem:[%s260 + $0x130] sm:$0xff]
      %v1155 = vld [vmem:[%s260 + $0x138] sm:$0xff]
      %v1156 = vld [vmem:[%s260 + $0x140] sm:$0xff]
      %v1157 = vld [vmem:[%s260 + $0x148] sm:$0xff]
      %v1158 = vmul.f32 %v1074, %v1116
      %v1159 = vmul.f32 %v1075, %v1117
      %v1160 = vmul.f32 %v1076, %v1118
      %v1161 = vmul.f32 %v1077, %v1119
      %v1162 = vmul.f32 %v1078, %v1120
      %v1163 = vmul.f32 %v1079, %v1121
      %v1164 = vmul.f32 %v1080, %v1122
      %v1165 = vmul.f32 %v1081, %v1123
      %v1166 = vmul.f32 %v1082, %v1124
      %v1167 = vmul.f32 %v1083, %v1125
      %v1168 = vmul.f32 %v1084, %v1126
      %v1169 = vmul.f32 %v1085, %v1127
      %v1170 = vmul.f32 %v1086, %v1128
      %v1171 = vmul.f32 %v1087, %v1129
      %v1172 = vmul.f32 %v1088, %v1130
      %v1173 = vmul.f32 %v1089, %v1131
      %v1174 = vmul.f32 %v1090, %v1132
      %v1175 = vmul.f32 %v1091, %v1133
      %v1176 = vmul.f32 %v1092, %v1134
      %v1177 = vmul.f32 %v1093, %v1135
      %v1178 = vmul.f32 %v1094, %v1136
      %v1179 = vmul.f32 %v1095, %v1137
      %v1180 = vmul.f32 %v1096, %v1138
      %v1181 = vmul.f32 %v1097, %v1139
      %v1182 = vmul.f32 %v1098, %v1140
      %v1183 = vmul.f32 %v1099, %v1141
      %v1184 = vmul.f32 %v1100, %v1142
      %v1185 = vmul.f32 %v1101, %v1143
      %v1186 = vmul.f32 %v1102, %v1144
      %v1187 = vmul.f32 %v1103, %v1145
      %v1188 = vmul.f32 %v1104, %v1146
      %v1189 = vmul.f32 %v1105, %v1147
      %v1190 = vmul.f32 %v1106, %v1148
      %v1191 = vmul.f32 %v1107, %v1149
      %v1192 = vmul.f32 %v1108, %v1150
      %v1193 = vmul.f32 %v1109, %v1151
      %v1194 = vmul.f32 %v1110, %v1152
      %v1195 = vmul.f32 %v1111, %v1153
      %v1196 = vmul.f32 %v1112, %v1154
      %v1197 = vmul.f32 %v1113, %v1155
      %v1198 = vmul.f32 %v1114, %v1156
      %v1199 = vmul.f32 %v1115, %v1157
      %1201 = vset.pattern.permute.xlu0 0
      %1202 = vperm.xlu0 %1201, %v1158
      %v1203 = vpop.permute.xlu0 %1202
      %1206 = vset.pattern.permute.xlu0 0
      %1207 = vperm.xlu0 %1206, %v1159
      %v1208 = vpop.permute.xlu0 %1207
      %1211 = vset.pattern.permute.xlu0 0
      %1212 = vperm.xlu0 %1211, %v1160
      %v1213 = vpop.permute.xlu0 %1212
      %1216 = vset.pattern.permute.xlu0 0
      %1217 = vperm.xlu0 %1216, %v1161
      %v1218 = vpop.permute.xlu0 %1217
      %1221 = vset.pattern.permute.xlu0 0
      %1222 = vperm.xlu0 %1221, %v1162
      %v1223 = vpop.permute.xlu0 %1222
      %1226 = vset.pattern.permute.xlu0 0
      %1227 = vperm.xlu0 %1226, %v1163
      %v1228 = vpop.permute.xlu0 %1227
      %1231 = vset.pattern.permute.xlu0 0
      %1232 = vperm.xlu0 %1231, %v1164
      %v1233 = vpop.permute.xlu0 %1232
      %1236 = vset.pattern.permute.xlu0 0
      %1237 = vperm.xlu0 %1236, %v1165
      %v1238 = vpop.permute.xlu0 %1237
      %1241 = vset.pattern.permute.xlu0 0
      %1242 = vperm.xlu0 %1241, %v1166
      %v1243 = vpop.permute.xlu0 %1242
      %1246 = vset.pattern.permute.xlu0 0
      %1247 = vperm.xlu0 %1246, %v1167
      %v1248 = vpop.permute.xlu0 %1247
      %1251 = vset.pattern.permute.xlu0 0
      %1252 = vperm.xlu0 %1251, %v1168
      %v1253 = vpop.permute.xlu0 %1252
      %1256 = vset.pattern.permute.xlu0 0
      %1257 = vperm.xlu0 %1256, %v1169
      %v1258 = vpop.permute.xlu0 %1257
      %1261 = vset.pattern.permute.xlu0 0
      %1262 = vperm.xlu0 %1261, %v1170
      %v1263 = vpop.permute.xlu0 %1262
      %1266 = vset.pattern.permute.xlu0 0
      %1267 = vperm.xlu0 %1266, %v1171
      %v1268 = vpop.permute.xlu0 %1267
      %1271 = vset.pattern.permute.xlu0 0
      %1272 = vperm.xlu0 %1271, %v1172
      %v1273 = vpop.permute.xlu0 %1272
      %1276 = vset.pattern.permute.xlu0 0
      %1277 = vperm.xlu0 %1276, %v1173
      %v1278 = vpop.permute.xlu0 %1277
      %1281 = vset.pattern.permute.xlu0 0
      %1282 = vperm.xlu0 %1281, %v1174
      %v1283 = vpop.permute.xlu0 %1282
      %1286 = vset.pattern.permute.xlu0 0
      %1287 = vperm.xlu0 %1286, %v1175
      %v1288 = vpop.permute.xlu0 %1287
      %1291 = vset.pattern.permute.xlu0 0
      %1292 = vperm.xlu0 %1291, %v1176
      %v1293 = vpop.permute.xlu0 %1292
      %1296 = vset.pattern.permute.xlu0 0
      %1297 = vperm.xlu0 %1296, %v1177
      %v1298 = vpop.permute.xlu0 %1297
      %1301 = vset.pattern.permute.xlu0 0
      %1302 = vperm.xlu0 %1301, %v1178
      %v1303 = vpop.permute.xlu0 %1302
      %1306 = vset.pattern.permute.xlu0 0
      %1307 = vperm.xlu0 %1306, %v1179
      %v1308 = vpop.permute.xlu0 %1307
      %1311 = vset.pattern.permute.xlu0 0
      %1312 = vperm.xlu0 %1311, %v1180
      %v1313 = vpop.permute.xlu0 %1312
      %1316 = vset.pattern.permute.xlu0 0
      %1317 = vperm.xlu0 %1316, %v1181
      %v1318 = vpop.permute.xlu0 %1317
      %1321 = vset.pattern.permute.xlu0 0
      %1322 = vperm.xlu0 %1321, %v1182
      %v1323 = vpop.permute.xlu0 %1322
      %1326 = vset.pattern.permute.xlu0 0
      %1327 = vperm.xlu0 %1326, %v1183
      %v1328 = vpop.permute.xlu0 %1327
      %1331 = vset.pattern.permute.xlu0 0
      %1332 = vperm.xlu0 %1331, %v1184
      %v1333 = vpop.permute.xlu0 %1332
      %1336 = vset.pattern.permute.xlu0 0
      %1337 = vperm.xlu0 %1336, %v1185
      %v1338 = vpop.permute.xlu0 %1337
      %1341 = vset.pattern.permute.xlu0 0
      %1342 = vperm.xlu0 %1341, %v1186
      %v1343 = vpop.permute.xlu0 %1342
      %1346 = vset.pattern.permute.xlu0 0
      %1347 = vperm.xlu0 %1346, %v1187
      %v1348 = vpop.permute.xlu0 %1347
      %1351 = vset.pattern.permute.xlu0 0
      %1352 = vperm.xlu0 %1351, %v1188
      %v1353 = vpop.permute.xlu0 %1352
      %1356 = vset.pattern.permute.xlu0 0
      %1357 = vperm.xlu0 %1356, %v1189
      %v1358 = vpop.permute.xlu0 %1357
      %1361 = vset.pattern.permute.xlu0 0
      %1362 = vperm.xlu0 %1361, %v1190
      %v1363 = vpop.permute.xlu0 %1362
      %1366 = vset.pattern.permute.xlu0 0
      %1367 = vperm.xlu0 %1366, %v1191
      %v1368 = vpop.permute.xlu0 %1367
      %1371 = vset.pattern.permute.xlu0 0
      %1372 = vperm.xlu0 %1371, %v1192
      %v1373 = vpop.permute.xlu0 %1372
      %1376 = vset.pattern.permute.xlu0 0
      %1377 = vperm.xlu0 %1376, %v1193
      %v1378 = vpop.permute.xlu0 %1377
      %1381 = vset.pattern.permute.xlu0 0
      %1382 = vperm.xlu0 %1381, %v1194
      %v1383 = vpop.permute.xlu0 %1382
      %1386 = vset.pattern.permute.xlu0 0
      %1387 = vperm.xlu0 %1386, %v1195
      %v1388 = vpop.permute.xlu0 %1387
      %1391 = vset.pattern.permute.xlu0 0
      %1392 = vperm.xlu0 %1391, %v1196
      %v1393 = vpop.permute.xlu0 %1392
      %1396 = vset.pattern.permute.xlu0 0
      %1397 = vperm.xlu0 %1396, %v1197
      %v1398 = vpop.permute.xlu0 %1397
      %1401 = vset.pattern.permute.xlu0 0
      %1402 = vperm.xlu0 %1401, %v1198
      %v1403 = vpop.permute.xlu0 %1402
      %1406 = vset.pattern.permute.xlu0 0
      %1407 = vperm.xlu0 %1406, %v1199
      %v1408 = vpop.permute.xlu0 %1407
      %v1410 = vmul.f32 %v654, %v1203
      %v1411 = vmul.f32 %v655, %v1203
      %v1412 = vmul.f32 %v656, %v1208
      %v1413 = vmul.f32 %v657, %v1208
      %v1414 = vmul.f32 %v658, %v1213
      %v1415 = vmul.f32 %v659, %v1213
      %v1416 = vmul.f32 %v660, %v1218
      %v1417 = vmul.f32 %v661, %v1218
      %v1418 = vmul.f32 %v662, %v1223
      %v1419 = vmul.f32 %v663, %v1223
      %v1420 = vmul.f32 %v664, %v1228
      %v1421 = vmul.f32 %v665, %v1228
      %v1422 = vmul.f32 %v666, %v1233
      %v1423 = vmul.f32 %v667, %v1233
      %v1424 = vmul.f32 %v668, %v1238
      %v1425 = vmul.f32 %v669, %v1238
      %v1426 = vmul.f32 %v670, %v1243
      %v1427 = vmul.f32 %v671, %v1243
      %v1428 = vmul.f32 %v672, %v1248
      %v1429 = vmul.f32 %v673, %v1248
      %v1430 = vmul.f32 %v674, %v1253
      %v1431 = vmul.f32 %v675, %v1253
      %v1432 = vmul.f32 %v676, %v1258
      %v1433 = vmul.f32 %v677, %v1258
      %v1434 = vmul.f32 %v678, %v1263
      %v1435 = vmul.f32 %v679, %v1263
      %v1436 = vmul.f32 %v680, %v1268
      %v1437 = vmul.f32 %v681, %v1268
      %v1438 = vmul.f32 %v682, %v1273
      %v1439 = vmul.f32 %v683, %v1273
      %v1440 = vmul.f32 %v684, %v1278
      %v1441 = vmul.f32 %v685, %v1278
      %v1442 = vmul.f32 %v686, %v1283
      %v1443 = vmul.f32 %v687, %v1283
      %v1444 = vmul.f32 %v688, %v1288
      %v1445 = vmul.f32 %v689, %v1288
      %v1446 = vmul.f32 %v690, %v1293
      %v1447 = vmul.f32 %v691, %v1293
      %v1448 = vmul.f32 %v692, %v1298
      %v1449 = vmul.f32 %v693, %v1298
      %v1450 = vmul.f32 %v694, %v1303
      %v1451 = vmul.f32 %v695, %v1303
      %v1452 = vmul.f32 %v696, %v1308
      %v1453 = vmul.f32 %v697, %v1308
      %v1454 = vmul.f32 %v698, %v1313
      %v1455 = vmul.f32 %v699, %v1313
      %v1456 = vmul.f32 %v700, %v1318
      %v1457 = vmul.f32 %v701, %v1318
      %v1458 = vmul.f32 %v702, %v1323
      %v1459 = vmul.f32 %v703, %v1323
      %v1460 = vmul.f32 %v704, %v1328
      %v1461 = vmul.f32 %v705, %v1328
      %v1462 = vmul.f32 %v706, %v1333
      %v1463 = vmul.f32 %v707, %v1333
      %v1464 = vmul.f32 %v708, %v1338
      %v1465 = vmul.f32 %v709, %v1338
      %v1466 = vmul.f32 %v710, %v1343
      %v1467 = vmul.f32 %v711, %v1343
      %v1468 = vmul.f32 %v712, %v1348
      %v1469 = vmul.f32 %v713, %v1348
      %v1470 = vmul.f32 %v714, %v1353
      %v1471 = vmul.f32 %v715, %v1353
      %v1472 = vmul.f32 %v716, %v1358
      %v1473 = vmul.f32 %v717, %v1358
      %v1474 = vmul.f32 %v718, %v1363
      %v1475 = vmul.f32 %v719, %v1363
      %v1476 = vmul.f32 %v720, %v1368
      %v1477 = vmul.f32 %v721, %v1368
      %v1478 = vmul.f32 %v722, %v1373
      %v1479 = vmul.f32 %v723, %v1373
      %v1480 = vmul.f32 %v724, %v1378
      %v1481 = vmul.f32 %v725, %v1378
      %v1482 = vmul.f32 %v726, %v1383
      %v1483 = vmul.f32 %v727, %v1383
      %v1484 = vmul.f32 %v728, %v1388
      %v1485 = vmul.f32 %v729, %v1388
      %v1486 = vmul.f32 %v730, %v1393
      %v1487 = vmul.f32 %v731, %v1393
      %v1488 = vmul.f32 %v732, %v1398
      %v1489 = vmul.f32 %v733, %v1398
      %v1490 = vmul.f32 %v734, %v1403
      %v1491 = vmul.f32 %v735, %v1403
      %v1492 = vmul.f32 %v736, %v1408
      %v1493 = vmul.f32 %v737, %v1408
      %v1494 = vld [vmem:[%s266] sm:$0xff]
      %v1495 = vld [vmem:[%s266 + $0x8] sm:$0xff]
      %v1496 = vld [vmem:[%s266 + $0x10] sm:$0xff]
      %v1497 = vld [vmem:[%s266 + $0x18] sm:$0xff]
      %v1498 = vld [vmem:[%s266 + $0x20] sm:$0xff]
      %v1499 = vld [vmem:[%s266 + $0x28] sm:$0xff]
      %v1500 = vld [vmem:[%s266 + $0x30] sm:$0xff]
      %v1501 = vld [vmem:[%s266 + $0x38] sm:$0xff]
      %v1502 = vld [vmem:[%s266 + $0x40] sm:$0xff]
      %v1503 = vld [vmem:[%s266 + $0x48] sm:$0xff]
      %v1504 = vld [vmem:[%s266 + $0x50] sm:$0xff]
      %v1505 = vld [vmem:[%s266 + $0x58] sm:$0xff]
      %v1506 = vld [vmem:[%s266 + $0x60] sm:$0xff]
      %v1507 = vld [vmem:[%s266 + $0x68] sm:$0xff]
      %v1508 = vld [vmem:[%s266 + $0x70] sm:$0xff]
      %v1509 = vld [vmem:[%s266 + $0x78] sm:$0xff]
      %v1510 = vld [vmem:[%s266 + $0x80] sm:$0xff]
      %v1511 = vld [vmem:[%s266 + $0x88] sm:$0xff]
      %v1512 = vld [vmem:[%s266 + $0x90] sm:$0xff]
      %v1513 = vld [vmem:[%s266 + $0x98] sm:$0xff]
      %v1514 = vld [vmem:[%s266 + $0xa0] sm:$0xff]
      %v1515 = vld [vmem:[%s266 + $0xa8] sm:$0xff]
      %v1516 = vld [vmem:[%s266 + $0xb0] sm:$0xff]
      %v1517 = vld [vmem:[%s266 + $0xb8] sm:$0xff]
      %v1518 = vld [vmem:[%s266 + $0xc0] sm:$0xff]
      %v1519 = vld [vmem:[%s266 + $0xc8] sm:$0xff]
      %v1520 = vld [vmem:[%s266 + $0xd0] sm:$0xff]
      %v1521 = vld [vmem:[%s266 + $0xd8] sm:$0xff]
      %v1522 = vld [vmem:[%s266 + $0xe0] sm:$0xff]
      %v1523 = vld [vmem:[%s266 + $0xe8] sm:$0xff]
      %v1524 = vld [vmem:[%s266 + $0xf0] sm:$0xff]
      %v1525 = vld [vmem:[%s266 + $0xf8] sm:$0xff]
      %v1526 = vld [vmem:[%s266 + $0x100] sm:$0xff]
      %v1527 = vld [vmem:[%s266 + $0x108] sm:$0xff]
      %v1528 = vld [vmem:[%s266 + $0x110] sm:$0xff]
      %v1529 = vld [vmem:[%s266 + $0x118] sm:$0xff]
      %v1530 = vld [vmem:[%s266 + $0x120] sm:$0xff]
      %v1531 = vld [vmem:[%s266 + $0x128] sm:$0xff]
      %v1532 = vld [vmem:[%s266 + $0x130] sm:$0xff]
      %v1533 = vld [vmem:[%s266 + $0x138] sm:$0xff]
      %v1534 = vld [vmem:[%s266 + $0x140] sm:$0xff]
      %v1535 = vld [vmem:[%s266 + $0x148] sm:$0xff]
      %1537 = vset.pattern.permute.xlu0 0
      %1538 = vperm.xlu0 %1537, %v1494
      %v1539 = vpop.permute.xlu0 %1538
      %1542 = vset.pattern.permute.xlu0 0
      %1543 = vperm.xlu0 %1542, %v1495
      %v1544 = vpop.permute.xlu0 %1543
      %1547 = vset.pattern.permute.xlu0 0
      %1548 = vperm.xlu0 %1547, %v1496
      %v1549 = vpop.permute.xlu0 %1548
      %1552 = vset.pattern.permute.xlu0 0
      %1553 = vperm.xlu0 %1552, %v1497
      %v1554 = vpop.permute.xlu0 %1553
      %1557 = vset.pattern.permute.xlu0 0
      %1558 = vperm.xlu0 %1557, %v1498
      %v1559 = vpop.permute.xlu0 %1558
      %1562 = vset.pattern.permute.xlu0 0
      %1563 = vperm.xlu0 %1562, %v1499
      %v1564 = vpop.permute.xlu0 %1563
      %1567 = vset.pattern.permute.xlu0 0
      %1568 = vperm.xlu0 %1567, %v1500
      %v1569 = vpop.permute.xlu0 %1568
      %1572 = vset.pattern.permute.xlu0 0
      %1573 = vperm.xlu0 %1572, %v1501
      %v1574 = vpop.permute.xlu0 %1573
      %1577 = vset.pattern.permute.xlu0 0
      %1578 = vperm.xlu0 %1577, %v1502
      %v1579 = vpop.permute.xlu0 %1578
      %1582 = vset.pattern.permute.xlu0 0
      %1583 = vperm.xlu0 %1582, %v1503
      %v1584 = vpop.permute.xlu0 %1583
      %1587 = vset.pattern.permute.xlu0 0
      %1588 = vperm.xlu0 %1587, %v1504
      %v1589 = vpop.permute.xlu0 %1588
      %1592 = vset.pattern.permute.xlu0 0
      %1593 = vperm.xlu0 %1592, %v1505
      %v1594 = vpop.permute.xlu0 %1593
      %1597 = vset.pattern.permute.xlu0 0
      %1598 = vperm.xlu0 %1597, %v1506
      %v1599 = vpop.permute.xlu0 %1598
      %1602 = vset.pattern.permute.xlu0 0
      %1603 = vperm.xlu0 %1602, %v1507
      %v1604 = vpop.permute.xlu0 %1603
      %1607 = vset.pattern.permute.xlu0 0
      %1608 = vperm.xlu0 %1607, %v1508
      %v1609 = vpop.permute.xlu0 %1608
      %1612 = vset.pattern.permute.xlu0 0
      %1613 = vperm.xlu0 %1612, %v1509
      %v1614 = vpop.permute.xlu0 %1613
      %1617 = vset.pattern.permute.xlu0 0
      %1618 = vperm.xlu0 %1617, %v1510
      %v1619 = vpop.permute.xlu0 %1618
      %1622 = vset.pattern.permute.xlu0 0
      %1623 = vperm.xlu0 %1622, %v1511
      %v1624 = vpop.permute.xlu0 %1623
      %1627 = vset.pattern.permute.xlu0 0
      %1628 = vperm.xlu0 %1627, %v1512
      %v1629 = vpop.permute.xlu0 %1628
      %1632 = vset.pattern.permute.xlu0 0
      %1633 = vperm.xlu0 %1632, %v1513
      %v1634 = vpop.permute.xlu0 %1633
      %1637 = vset.pattern.permute.xlu0 0
      %1638 = vperm.xlu0 %1637, %v1514
      %v1639 = vpop.permute.xlu0 %1638
      %1642 = vset.pattern.permute.xlu0 0
      %1643 = vperm.xlu0 %1642, %v1515
      %v1644 = vpop.permute.xlu0 %1643
      %1647 = vset.pattern.permute.xlu0 0
      %1648 = vperm.xlu0 %1647, %v1516
      %v1649 = vpop.permute.xlu0 %1648
      %1652 = vset.pattern.permute.xlu0 0
      %1653 = vperm.xlu0 %1652, %v1517
      %v1654 = vpop.permute.xlu0 %1653
      %1657 = vset.pattern.permute.xlu0 0
      %1658 = vperm.xlu0 %1657, %v1518
      %v1659 = vpop.permute.xlu0 %1658
      %1662 = vset.pattern.permute.xlu0 0
      %1663 = vperm.xlu0 %1662, %v1519
      %v1664 = vpop.permute.xlu0 %1663
      %1667 = vset.pattern.permute.xlu0 0
      %1668 = vperm.xlu0 %1667, %v1520
      %v1669 = vpop.permute.xlu0 %1668
      %1672 = vset.pattern.permute.xlu0 0
      %1673 = vperm.xlu0 %1672, %v1521
      %v1674 = vpop.permute.xlu0 %1673
      %1677 = vset.pattern.permute.xlu0 0
      %1678 = vperm.xlu0 %1677, %v1522
      %v1679 = vpop.permute.xlu0 %1678
      %1682 = vset.pattern.permute.xlu0 0
      %1683 = vperm.xlu0 %1682, %v1523
      %v1684 = vpop.permute.xlu0 %1683
      %1687 = vset.pattern.permute.xlu0 0
      %1688 = vperm.xlu0 %1687, %v1524
      %v1689 = vpop.permute.xlu0 %1688
      %1692 = vset.pattern.permute.xlu0 0
      %1693 = vperm.xlu0 %1692, %v1525
      %v1694 = vpop.permute.xlu0 %1693
      %1697 = vset.pattern.permute.xlu0 0
      %1698 = vperm.xlu0 %1697, %v1526
      %v1699 = vpop.permute.xlu0 %1698
      %1702 = vset.pattern.permute.xlu0 0
      %1703 = vperm.xlu0 %1702, %v1527
      %v1704 = vpop.permute.xlu0 %1703
      %1707 = vset.pattern.permute.xlu0 0
      %1708 = vperm.xlu0 %1707, %v1528
      %v1709 = vpop.permute.xlu0 %1708
      %1712 = vset.pattern.permute.xlu0 0
      %1713 = vperm.xlu0 %1712, %v1529
      %v1714 = vpop.permute.xlu0 %1713
      %1717 = vset.pattern.permute.xlu0 0
      %1718 = vperm.xlu0 %1717, %v1530
      %v1719 = vpop.permute.xlu0 %1718
      %1722 = vset.pattern.permute.xlu0 0
      %1723 = vperm.xlu0 %1722, %v1531
      %v1724 = vpop.permute.xlu0 %1723
      %1727 = vset.pattern.permute.xlu0 0
      %1728 = vperm.xlu0 %1727, %v1532
      %v1729 = vpop.permute.xlu0 %1728
      %1732 = vset.pattern.permute.xlu0 0
      %1733 = vperm.xlu0 %1732, %v1533
      %v1734 = vpop.permute.xlu0 %1733
      %1737 = vset.pattern.permute.xlu0 0
      %1738 = vperm.xlu0 %1737, %v1534
      %v1739 = vpop.permute.xlu0 %1738
      %1742 = vset.pattern.permute.xlu0 0
      %1743 = vperm.xlu0 %1742, %v1535
      %v1744 = vpop.permute.xlu0 %1743
      %v1746 = vadd.f32 %v1410, %v1539
      %v1747 = vadd.f32 %v1411, %v1539
      %v1748 = vadd.f32 %v1412, %v1544
      %v1749 = vadd.f32 %v1413, %v1544
      %v1750 = vadd.f32 %v1414, %v1549
      %v1751 = vadd.f32 %v1415, %v1549
      %v1752 = vadd.f32 %v1416, %v1554
      %v1753 = vadd.f32 %v1417, %v1554
      %v1754 = vadd.f32 %v1418, %v1559
      %v1755 = vadd.f32 %v1419, %v1559
      %v1756 = vadd.f32 %v1420, %v1564
      %v1757 = vadd.f32 %v1421, %v1564
      %v1758 = vadd.f32 %v1422, %v1569
      %v1759 = vadd.f32 %v1423, %v1569
      %v1760 = vadd.f32 %v1424, %v1574
      %v1761 = vadd.f32 %v1425, %v1574
      %v1762 = vadd.f32 %v1426, %v1579
      %v1763 = vadd.f32 %v1427, %v1579
      %v1764 = vadd.f32 %v1428, %v1584
      %v1765 = vadd.f32 %v1429, %v1584
      %v1766 = vadd.f32 %v1430, %v1589
      %v1767 = vadd.f32 %v1431, %v1589
      %v1768 = vadd.f32 %v1432, %v1594
      %v1769 = vadd.f32 %v1433, %v1594
      %v1770 = vadd.f32 %v1434, %v1599
      %v1771 = vadd.f32 %v1435, %v1599
      %v1772 = vadd.f32 %v1436, %v1604
      %v1773 = vadd.f32 %v1437, %v1604
      %v1774 = vadd.f32 %v1438, %v1609
      %v1775 = vadd.f32 %v1439, %v1609
      %v1776 = vadd.f32 %v1440, %v1614
      %v1777 = vadd.f32 %v1441, %v1614
      %v1778 = vadd.f32 %v1442, %v1619
      %v1779 = vadd.f32 %v1443, %v1619
      %v1780 = vadd.f32 %v1444, %v1624
      %v1781 = vadd.f32 %v1445, %v1624
      %v1782 = vadd.f32 %v1446, %v1629
      %v1783 = vadd.f32 %v1447, %v1629
      %v1784 = vadd.f32 %v1448, %v1634
      %v1785 = vadd.f32 %v1449, %v1634
      %v1786 = vadd.f32 %v1450, %v1639
      %v1787 = vadd.f32 %v1451, %v1639
      %v1788 = vadd.f32 %v1452, %v1644
      %v1789 = vadd.f32 %v1453, %v1644
      %v1790 = vadd.f32 %v1454, %v1649
      %v1791 = vadd.f32 %v1455, %v1649
      %v1792 = vadd.f32 %v1456, %v1654
      %v1793 = vadd.f32 %v1457, %v1654
      %v1794 = vadd.f32 %v1458, %v1659
      %v1795 = vadd.f32 %v1459, %v1659
      %v1796 = vadd.f32 %v1460, %v1664
      %v1797 = vadd.f32 %v1461, %v1664
      %v1798 = vadd.f32 %v1462, %v1669
      %v1799 = vadd.f32 %v1463, %v1669
      %v1800 = vadd.f32 %v1464, %v1674
      %v1801 = vadd.f32 %v1465, %v1674
      %v1802 = vadd.f32 %v1466, %v1679
      %v1803 = vadd.f32 %v1467, %v1679
      %v1804 = vadd.f32 %v1468, %v1684
      %v1805 = vadd.f32 %v1469, %v1684
      %v1806 = vadd.f32 %v1470, %v1689
      %v1807 = vadd.f32 %v1471, %v1689
      %v1808 = vadd.f32 %v1472, %v1694
      %v1809 = vadd.f32 %v1473, %v1694
      %v1810 = vadd.f32 %v1474, %v1699
      %v1811 = vadd.f32 %v1475, %v1699
      %v1812 = vadd.f32 %v1476, %v1704
      %v1813 = vadd.f32 %v1477, %v1704
      %v1814 = vadd.f32 %v1478, %v1709
      %v1815 = vadd.f32 %v1479, %v1709
      %v1816 = vadd.f32 %v1480, %v1714
      %v1817 = vadd.f32 %v1481, %v1714
      %v1818 = vadd.f32 %v1482, %v1719
      %v1819 = vadd.f32 %v1483, %v1719
      %v1820 = vadd.f32 %v1484, %v1724
      %v1821 = vadd.f32 %v1485, %v1724
      %v1822 = vadd.f32 %v1486, %v1729
      %v1823 = vadd.f32 %v1487, %v1729
      %v1824 = vadd.f32 %v1488, %v1734
      %v1825 = vadd.f32 %v1489, %v1734
      %v1826 = vadd.f32 %v1490, %v1739
      %v1827 = vadd.f32 %v1491, %v1739
      %v1828 = vadd.f32 %v1492, %v1744
      %v1829 = vadd.f32 %v1493, %v1744
      %v1830 = vadd.f32 %v1746, %v359
      %v1831 = vadd.f32 %v1747, %v360
      %v1832 = vadd.f32 %v1748, %v361
      %v1833 = vadd.f32 %v1749, %v362
      %v1834 = vadd.f32 %v1750, %v363
      %v1835 = vadd.f32 %v1751, %v364
      %v1836 = vadd.f32 %v1752, %v365
      %v1837 = vadd.f32 %v1753, %v366
      %v1838 = vadd.f32 %v1754, %v367
      %v1839 = vadd.f32 %v1755, %v368
      %v1840 = vadd.f32 %v1756, %v369
      %v1841 = vadd.f32 %v1757, %v370
      %v1842 = vadd.f32 %v1758, %v371
      %v1843 = vadd.f32 %v1759, %v372
      %v1844 = vadd.f32 %v1760, %v373
      %v1845 = vadd.f32 %v1761, %v374
      %v1846 = vadd.f32 %v1762, %v375
      %v1847 = vadd.f32 %v1763, %v376
      %v1848 = vadd.f32 %v1764, %v377
      %v1849 = vadd.f32 %v1765, %v378
      %v1850 = vadd.f32 %v1766, %v379
      %v1851 = vadd.f32 %v1767, %v380
      %v1852 = vadd.f32 %v1768, %v381
      %v1853 = vadd.f32 %v1769, %v382
      %v1854 = vadd.f32 %v1770, %v383
      %v1855 = vadd.f32 %v1771, %v384
      %v1856 = vadd.f32 %v1772, %v385
      %v1857 = vadd.f32 %v1773, %v386
      %v1858 = vadd.f32 %v1774, %v387
      %v1859 = vadd.f32 %v1775, %v388
      %v1860 = vadd.f32 %v1776, %v389
      %v1861 = vadd.f32 %v1777, %v390
      %v1862 = vadd.f32 %v1778, %v391
      %v1863 = vadd.f32 %v1779, %v392
      %v1864 = vadd.f32 %v1780, %v393
      %v1865 = vadd.f32 %v1781, %v394
      %v1866 = vadd.f32 %v1782, %v395
      %v1867 = vadd.f32 %v1783, %v396
      %v1868 = vadd.f32 %v1784, %v397
      %v1869 = vadd.f32 %v1785, %v398
      %v1870 = vadd.f32 %v1786, %v399
      %v1871 = vadd.f32 %v1787, %v400
      %v1872 = vadd.f32 %v1788, %v401
      %v1873 = vadd.f32 %v1789, %v402
      %v1874 = vadd.f32 %v1790, %v403
      %v1875 = vadd.f32 %v1791, %v404
      %v1876 = vadd.f32 %v1792, %v405
      %v1877 = vadd.f32 %v1793, %v406
      %v1878 = vadd.f32 %v1794, %v407
      %v1879 = vadd.f32 %v1795, %v408
      %v1880 = vadd.f32 %v1796, %v409
      %v1881 = vadd.f32 %v1797, %v410
      %v1882 = vadd.f32 %v1798, %v411
      %v1883 = vadd.f32 %v1799, %v412
      %v1884 = vadd.f32 %v1800, %v413
      %v1885 = vadd.f32 %v1801, %v414
      %v1886 = vadd.f32 %v1802, %v415
      %v1887 = vadd.f32 %v1803, %v416
      %v1888 = vadd.f32 %v1804, %v417
      %v1889 = vadd.f32 %v1805, %v418
      %v1890 = vadd.f32 %v1806, %v419
      %v1891 = vadd.f32 %v1807, %v420
      %v1892 = vadd.f32 %v1808, %v421
      %v1893 = vadd.f32 %v1809, %v422
      %v1894 = vadd.f32 %v1810, %v423
      %v1895 = vadd.f32 %v1811, %v424
      %v1896 = vadd.f32 %v1812, %v425
      %v1897 = vadd.f32 %v1813, %v426
      %v1898 = vadd.f32 %v1814, %v427
      %v1899 = vadd.f32 %v1815, %v428
      %v1900 = vadd.f32 %v1816, %v429
      %v1901 = vadd.f32 %v1817, %v430
      %v1902 = vadd.f32 %v1818, %v431
      %v1903 = vadd.f32 %v1819, %v432
      %v1904 = vadd.f32 %v1820, %v433
      %v1905 = vadd.f32 %v1821, %v434
      %v1906 = vadd.f32 %v1822, %v435
      %v1907 = vadd.f32 %v1823, %v436
      %v1908 = vadd.f32 %v1824, %v437
      %v1909 = vadd.f32 %v1825, %v438
      %v1910 = vadd.f32 %v1826, %v439
      %v1911 = vadd.f32 %v1827, %v440
      %v1912 = vadd.f32 %v1828, %v441
      %v1913 = vadd.f32 %v1829, %v442
      %1914 = vst [vmem:[%s273] sm:$0xff] %v1830
      %1915 = vst.msk [vmem:[%s273 + $0x8] sm:$0xff] %vm443, %v1831
      %1916 = vst [vmem:[%s273 + $0x10] sm:$0xff] %v1832
      %1917 = vst.msk [vmem:[%s273 + $0x18] sm:$0xff] %vm443, %v1833
      %1918 = vst [vmem:[%s273 + $0x20] sm:$0xff] %v1834
      %1919 = vst.msk [vmem:[%s273 + $0x28] sm:$0xff] %vm443, %v1835
      %1920 = vst [vmem:[%s273 + $0x30] sm:$0xff] %v1836
      %1921 = vst.msk [vmem:[%s273 + $0x38] sm:$0xff] %vm443, %v1837
      %1922 = vst [vmem:[%s273 + $0x40] sm:$0xff] %v1838
      %1923 = vst.msk [vmem:[%s273 + $0x48] sm:$0xff] %vm443, %v1839
      %1924 = vst [vmem:[%s273 + $0x50] sm:$0xff] %v1840
      %1925 = vst.msk [vmem:[%s273 + $0x58] sm:$0xff] %vm443, %v1841
      %1926 = vst [vmem:[%s273 + $0x60] sm:$0xff] %v1842
      %1927 = vst.msk [vmem:[%s273 + $0x68] sm:$0xff] %vm443, %v1843
      %1928 = vst [vmem:[%s273 + $0x70] sm:$0xff] %v1844
      %1929 = vst.msk [vmem:[%s273 + $0x78] sm:$0xff] %vm443, %v1845
      %1930 = vst [vmem:[%s273 + $0x80] sm:$0xff] %v1846
      %1931 = vst.msk [vmem:[%s273 + $0x88] sm:$0xff] %vm443, %v1847
      %1932 = vst [vmem:[%s273 + $0x90] sm:$0xff] %v1848
      %1933 = vst.msk [vmem:[%s273 + $0x98] sm:$0xff] %vm443, %v1849
      %1934 = vst [vmem:[%s273 + $0xa0] sm:$0xff] %v1850
      %1935 = vst.msk [vmem:[%s273 + $0xa8] sm:$0xff] %vm443, %v1851
      %1936 = vst [vmem:[%s273 + $0xb0] sm:$0xff] %v1852
      %1937 = vst.msk [vmem:[%s273 + $0xb8] sm:$0xff] %vm443, %v1853
      %1938 = vst [vmem:[%s273 + $0xc0] sm:$0xff] %v1854
      %1939 = vst.msk [vmem:[%s273 + $0xc8] sm:$0xff] %vm443, %v1855
      %1940 = vst [vmem:[%s273 + $0xd0] sm:$0xff] %v1856
      %1941 = vst.msk [vmem:[%s273 + $0xd8] sm:$0xff] %vm443, %v1857
      %1942 = vst [vmem:[%s273 + $0xe0] sm:$0xff] %v1858
      %1943 = vst.msk [vmem:[%s273 + $0xe8] sm:$0xff] %vm443, %v1859
      %1944 = vst [vmem:[%s273 + $0xf0] sm:$0xff] %v1860
      %1945 = vst.msk [vmem:[%s273 + $0xf8] sm:$0xff] %vm443, %v1861
      %1946 = vst [vmem:[%s273 + $0x100] sm:$0xff] %v1862
      %1947 = vst.msk [vmem:[%s273 + $0x108] sm:$0xff] %vm443, %v1863
      %1948 = vst [vmem:[%s273 + $0x110] sm:$0xff] %v1864
      %1949 = vst.msk [vmem:[%s273 + $0x118] sm:$0xff] %vm443, %v1865
      %1950 = vst [vmem:[%s273 + $0x120] sm:$0xff] %v1866
      %1951 = vst.msk [vmem:[%s273 + $0x128] sm:$0xff] %vm443, %v1867
      %1952 = vst [vmem:[%s273 + $0x130] sm:$0xff] %v1868
      %1953 = vst.msk [vmem:[%s273 + $0x138] sm:$0xff] %vm443, %v1869
      %1954 = vst [vmem:[%s273 + $0x140] sm:$0xff] %v1870
      %1955 = vst.msk [vmem:[%s273 + $0x148] sm:$0xff] %vm443, %v1871
      %1956 = vst [vmem:[%s273 + $0x150] sm:$0xff] %v1872
      %1957 = vst.msk [vmem:[%s273 + $0x158] sm:$0xff] %vm443, %v1873
      %1958 = vst [vmem:[%s273 + $0x160] sm:$0xff] %v1874
      %1959 = vst.msk [vmem:[%s273 + $0x168] sm:$0xff] %vm443, %v1875
      %1960 = vst [vmem:[%s273 + $0x170] sm:$0xff] %v1876
      %1961 = vst.msk [vmem:[%s273 + $0x178] sm:$0xff] %vm443, %v1877
      %1962 = vst [vmem:[%s273 + $0x180] sm:$0xff] %v1878
      %1963 = vst.msk [vmem:[%s273 + $0x188] sm:$0xff] %vm443, %v1879
      %1964 = vst [vmem:[%s273 + $0x190] sm:$0xff] %v1880
      %1965 = vst.msk [vmem:[%s273 + $0x198] sm:$0xff] %vm443, %v1881
      %1966 = vst [vmem:[%s273 + $0x1a0] sm:$0xff] %v1882
      %1967 = vst.msk [vmem:[%s273 + $0x1a8] sm:$0xff] %vm443, %v1883
      %1968 = vst [vmem:[%s273 + $0x1b0] sm:$0xff] %v1884
      %1969 = vst.msk [vmem:[%s273 + $0x1b8] sm:$0xff] %vm443, %v1885
      %1970 = vst [vmem:[%s273 + $0x1c0] sm:$0xff] %v1886
      %1971 = vst.msk [vmem:[%s273 + $0x1c8] sm:$0xff] %vm443, %v1887
      %1972 = vst [vmem:[%s273 + $0x1d0] sm:$0xff] %v1888
      %1973 = vst.msk [vmem:[%s273 + $0x1d8] sm:$0xff] %vm443, %v1889
      %1974 = vst [vmem:[%s273 + $0x1e0] sm:$0xff] %v1890
      %1975 = vst.msk [vmem:[%s273 + $0x1e8] sm:$0xff] %vm443, %v1891
      %1976 = vst [vmem:[%s273 + $0x1f0] sm:$0xff] %v1892
      %1977 = vst.msk [vmem:[%s273 + $0x1f8] sm:$0xff] %vm443, %v1893
      %1978 = vst [vmem:[%s273 + $0x200] sm:$0xff] %v1894
      %1979 = vst.msk [vmem:[%s273 + $0x208] sm:$0xff] %vm443, %v1895
      %1980 = vst [vmem:[%s273 + $0x210] sm:$0xff] %v1896
      %1981 = vst.msk [vmem:[%s273 + $0x218] sm:$0xff] %vm443, %v1897
      %1982 = vst [vmem:[%s273 + $0x220] sm:$0xff] %v1898
      %1983 = vst.msk [vmem:[%s273 + $0x228] sm:$0xff] %vm443, %v1899
      %1984 = vst [vmem:[%s273 + $0x230] sm:$0xff] %v1900
      %1985 = vst.msk [vmem:[%s273 + $0x238] sm:$0xff] %vm443, %v1901
      %1986 = vst [vmem:[%s273 + $0x240] sm:$0xff] %v1902
      %1987 = vst.msk [vmem:[%s273 + $0x248] sm:$0xff] %vm443, %v1903
      %1988 = vst [vmem:[%s273 + $0x250] sm:$0xff] %v1904
      %1989 = vst.msk [vmem:[%s273 + $0x258] sm:$0xff] %vm443, %v1905
      %1990 = vst [vmem:[%s273 + $0x260] sm:$0xff] %v1906
      %1991 = vst.msk [vmem:[%s273 + $0x268] sm:$0xff] %vm443, %v1907
      %1992 = vst [vmem:[%s273 + $0x270] sm:$0xff] %v1908
      %1993 = vst.msk [vmem:[%s273 + $0x278] sm:$0xff] %vm443, %v1909
      %1994 = vst [vmem:[%s273 + $0x280] sm:$0xff] %v1910
      %1995 = vst.msk [vmem:[%s273 + $0x288] sm:$0xff] %vm443, %v1911
      %1996 = vst [vmem:[%s273 + $0x290] sm:$0xff] %v1912
      %1997 = vst.msk [vmem:[%s273 + $0x298] sm:$0xff] %vm443, %v1913
      %s1998 = smul.u32 42, %s15
      %p1999 = scmp.lt.s32.totalorder %s1998, 167
      %s2000 = scalar_select %p1999, %s1998, 167
      %s2001 = smul.addr %s2000, 2
      %s2002 = smul.addr %s2001, 8
      %s2003 = scalar_lea.vmem %s4, %s2002
      // Predicated region
      $region37: #{batchnorm_add.1} parent=35 // pred_check
        %p2004 = pneg %p137
      $region38: #{batchnorm_add.1} parent=35 // pred_check_branch
        %2006 = sbr.rel (%p2004) target = $region40
      $region39: #{batchnorm_add.1} parent=35 // pred_region
        %s2007 = smul.u32 42, %s15
      $region40: #{batchnorm_add.1} parent=35 // pred_fallthru
        _
    $region36: #{batchnorm_add.1} parent=5 // pred_fallthru
      _
    %p2008 = scmp.le.s32.totalorder 2, %s10
    // Predicated region
    $region41: #{batchnorm_add.1} parent=5 // pred_check
      %p2009 = pneg %p2008
    $region42: #{batchnorm_add.1} parent=5 // pred_check_branch
      %2011 = sbr.rel (%p2009) target = $region44
    $region43: #{batchnorm_add.1} parent=5 // pred_region
      %s2012 = ssub.s32 %s10, 2
      // Predicated region
      $region45: #{batchnorm_add.1} parent=43 // pred_check
        %p2013 = pneg %p143
      $region46: #{batchnorm_add.1} parent=43 // pred_check_branch
        %2015 = sbr.rel (%p2013) target = $region48
      $region47: #{batchnorm_add.1} parent=43 // pred_region
        %s2016 = smul.u32 42, %s16
        %p2017 = scmp.lt.s32.totalorder %s2016, 167
        %s2018 = scalar_select %p2017, %s2016, 167
        %s2019 = smul.addr %s2018, 2
        %s2020 = smul.addr %s2019, 8
        %s2021 = scalar_lea.vmem %s4, %s2020
      $region48: #{batchnorm_add.1} parent=43 // pred_fallthru
        _
    $region44: #{batchnorm_add.1} parent=5 // pred_fallthru
      _
  $region6: #{batchnorm_add.1} parent=0 // loop_footer
    %s14 = sadd.s32 1, %s10
  $region7: #{batchnorm_add.1} parent=0 // loop_footer_branch
    %9 = sbr.rel target = $region3
  $region8: #{batchnorm_add.1} parent=0 // loop_exit
    _

</llo_original>
